<compile_context>
chip_gen: v6e
topology: v6e:2x2x1
jax: 0.10.0
libtpu: 0.0.40
codegen_flags: <defaults>
</compile_context>

<pallas_src>
import functools

import jax
import jax.numpy as jnp
from jax.experimental import pallas as pl
from jax.experimental.pallas import tpu as pltpu


def _s2d_kernel(x_ref, o_ref, *, tho, wo):
    # x_ref: (tc, 2*tho, 2*wo)  input rows (both H parities, full W) for this tile
    # o_ref: (4, tc, tho, wo)   the four parity quadrants, quadrant index k = 2*dw + dh
    x = x_ref[...]
    tc = x.shape[0]
    # Split row parity (dh) and column parity (dw) with one reshape; all
    # subsequent accesses are unit-stride slices (no strided ref indexing).
    x = x.reshape(tc, tho, 2, wo, 2)          # (c, ho, dh, wo, dw)
    for dw in range(2):
        for dh in range(2):
            o_ref[2 * dw + dh] = x[:, :, dh, :, dw]


def _pick_tile(n, max_tile, quantum):
    """Largest divisor of n that is <= max_tile and (== n or a multiple of quantum)."""
    if n <= max_tile:
        return n
    t = (max_tile // quantum) * quantum
    while t >= quantum:
        if n % t == 0:
            return t
        t -= quantum
    return n  # fallback: whole dimension (always a legal block)


def space_to_depth(x):
    """NCHW space-to-depth: [B, C, H, W] -> [B, 4C, H//2, W//2] (torch channel order)."""
    B, C, H, W = x.shape
    if H % 2 or W % 2:
        raise ValueError("H and W must be even")
    Ho, Wo = H // 2, W // 2
    itemsize = jnp.dtype(x.dtype).itemsize

    # Output-row tile: cap the per-channel input slab (2*tho rows x W) at ~512 KiB,
    # keep tho a multiple of 8 (or the full Ho) so block shapes satisfy the (8,128)
    # rule, and make it divide Ho exactly (no partial blocks, no padding).
    max_rows_out = max(8, (512 * 1024) // (2 * W * itemsize))
    tho = _pick_tile(Ho, min(Ho, max_rows_out), 8)

    # Channel tile: amortize per-grid-step overhead while keeping the input block
    # <= ~2 MiB (output block is the same size) so double-buffered in + out stays
    # comfortably inside scoped VMEM on v5e/v6e/v7x.
    blk_bytes_per_chan = 2 * tho * W * itemsize
    tc = max(1, min(C, (2 * 1024 * 1024) // max(1, blk_bytes_per_chan)))
    while C % tc:
        tc -= 1

    grid = (B, C // tc, Ho // tho)

    out5 = pl.pallas_call(
        functools.partial(_s2d_kernel, tho=tho, wo=Wo),
        out_shape=jax.ShapeDtypeStruct((B, 4, C, Ho, Wo), x.dtype),
        grid=grid,
        in_specs=[
            # Block covers 2*tho consecutive input rows (both parities), full width.
            pl.BlockSpec((None, tc, 2 * tho, W), lambda b, ci, hi: (b, ci, hi, 0)),
        ],
        out_specs=pl.BlockSpec(
            (None, 4, tc, tho, Wo), lambda b, ci, hi: (b, 0, ci, hi, 0)),
        compiler_params=pltpu.CompilerParams(
            dimension_semantics=("parallel", "parallel", "parallel")),
    )(x)

    # Free reshape (merges adjacent dims): channel index becomes k*C + c, exactly
    # torch.cat([...], dim=1) ordering for quadrants [(0,0),(1,0),(0,1),(1,1)].
    return out5.reshape(B, 4 * C, Ho, Wo)


if __name__ == "__main__":
    x = jax.random.normal(jax.random.PRNGKey(0), (2, 4, 16, 16), jnp.float32)
    fwd = jax.jit(space_to_depth)
    out = jax.block_until_ready(fwd(x))
    assert out.shape == (2, 16, 8, 8), out.shape

    # Pure-JAX reference of the PyTorch module (outside Pallas); exact match expected.
    ref = jnp.concatenate(
        [x[..., ::2, ::2], x[..., 1::2, ::2], x[..., ::2, 1::2], x[..., 1::2, 1::2]],
        axis=1,
    )
    assert bool(jnp.array_equal(out, ref)), "space_to_depth mismatch vs reference"
    print("KERNEL_OK")
</pallas_src>

<mosaic_0001>
module attributes {stable_mosaic.version = 11 : i64} {
  func.func @_s2d_kernel(%arg0: i32, %arg1: i32, %arg2: i32, %arg3: memref<1x4x16x16xf32, #tpu.memory_space<vmem>>, %arg4: memref<1x4x4x8x8xf32, #tpu.memory_space<vmem>>) attributes {dimension_semantics = [#tpu.dimension_semantics<parallel>, #tpu.dimension_semantics<parallel>, #tpu.dimension_semantics<parallel>], iteration_bounds = array<i64: 2, 1, 1>, scalar_prefetch = 0 : i64, scratch_operands = 0 : i64, tpu.core_type = #tpu.core_type<tc>, window_params = [{transform_indices = @transform_0, window_bounds = array<i64: 1, 4, 16, 16>}, {transform_indices = @transform_1, window_bounds = array<i64: 1, 4, 4, 8, 8>}]} {
    %c0 = arith.constant 0 : index
    %c0_0 = arith.constant 0 : index
    %c0_1 = arith.constant 0 : index
    %c0_2 = arith.constant 0 : index
    %0 = vector.load %arg3[%c0, %c0_0, %c0_1, %c0_2] : memref<1x4x16x16xf32, #tpu.memory_space<vmem>>, vector<1x4x16x16xf32>
    %1 = vector.shape_cast %0 : vector<1x4x16x16xf32> to vector<4x16x16xf32>
    %2 = vector.shape_cast %1 : vector<4x16x16xf32> to vector<4x8x2x8x2xf32>
    %3 = vector.extract_strided_slice %2 {offsets = [0, 0, 0, 0, 0], sizes = [4, 8, 1, 8, 1], strides = [1, 1, 1, 1, 1]} : vector<4x8x2x8x2xf32> to vector<4x8x1x8x1xf32>
    %4 = vector.shape_cast %3 : vector<4x8x1x8x1xf32> to vector<4x8x8xf32>
    %c0_3 = arith.constant 0 : index
    %c0_4 = arith.constant 0 : index
    %c0_5 = arith.constant 0 : index
    %c0_6 = arith.constant 0 : index
    %c0_7 = arith.constant 0 : index
    %5 = vector.load %arg4[%c0_3, %c0_4, %c0_5, %c0_6, %c0_7] : memref<1x4x4x8x8xf32, #tpu.memory_space<vmem>>, vector<1x1x4x8x8xf32>
    %6 = vector.shape_cast %5 : vector<1x1x4x8x8xf32> to vector<4x8x8xf32>
    %7 = vector.shape_cast %4 : vector<4x8x8xf32> to vector<1x1x4x8x8xf32>
    tpu.vector_store %arg4[%c0_3, %c0_4, %c0_5, %c0_6, %c0_7], %7 {strides = array<i32>} : memref<1x4x4x8x8xf32, #tpu.memory_space<vmem>>, vector<1x1x4x8x8xf32>,
    %8 = vector.extract_strided_slice %2 {offsets = [0, 0, 1, 0, 0], sizes = [4, 8, 1, 8, 1], strides = [1, 1, 1, 1, 1]} : vector<4x8x2x8x2xf32> to vector<4x8x1x8x1xf32>
    %9 = vector.shape_cast %8 : vector<4x8x1x8x1xf32> to vector<4x8x8xf32>
    %c0_8 = arith.constant 0 : index
    %c1 = arith.constant 1 : index
    %c0_9 = arith.constant 0 : index
    %c0_10 = arith.constant 0 : index
    %c0_11 = arith.constant 0 : index
    %10 = vector.load %arg4[%c0_8, %c1, %c0_9, %c0_10, %c0_11] : memref<1x4x4x8x8xf32, #tpu.memory_space<vmem>>, vector<1x1x4x8x8xf32>
    %11 = vector.shape_cast %10 : vector<1x1x4x8x8xf32> to vector<4x8x8xf32>
    %12 = vector.shape_cast %9 : vector<4x8x8xf32> to vector<1x1x4x8x8xf32>
    tpu.vector_store %arg4[%c0_8, %c1, %c0_9, %c0_10, %c0_11], %12 {strides = array<i32>} : memref<1x4x4x8x8xf32, #tpu.memory_space<vmem>>, vector<1x1x4x8x8xf32>,
    %13 = vector.extract_strided_slice %2 {offsets = [0, 0, 0, 0, 1], sizes = [4, 8, 1, 8, 1], strides = [1, 1, 1, 1, 1]} : vector<4x8x2x8x2xf32> to vector<4x8x1x8x1xf32>
    %14 = vector.shape_cast %13 : vector<4x8x1x8x1xf32> to vector<4x8x8xf32>
    %c0_12 = arith.constant 0 : index
    %c2 = arith.constant 2 : index
    %c0_13 = arith.constant 0 : index
    %c0_14 = arith.constant 0 : index
    %c0_15 = arith.constant 0 : index
    %15 = vector.load %arg4[%c0_12, %c2, %c0_13, %c0_14, %c0_15] : memref<1x4x4x8x8xf32, #tpu.memory_space<vmem>>, vector<1x1x4x8x8xf32>
    %16 = vector.shape_cast %15 : vector<1x1x4x8x8xf32> to vector<4x8x8xf32>
    %17 = vector.shape_cast %14 : vector<4x8x8xf32> to vector<1x1x4x8x8xf32>
    tpu.vector_store %arg4[%c0_12, %c2, %c0_13, %c0_14, %c0_15], %17 {strides = array<i32>} : memref<1x4x4x8x8xf32, #tpu.memory_space<vmem>>, vector<1x1x4x8x8xf32>,
    %18 = vector.extract_strided_slice %2 {offsets = [0, 0, 1, 0, 1], sizes = [4, 8, 1, 8, 1], strides = [1, 1, 1, 1, 1]} : vector<4x8x2x8x2xf32> to vector<4x8x1x8x1xf32>
    %19 = vector.shape_cast %18 : vector<4x8x1x8x1xf32> to vector<4x8x8xf32>
    %c0_16 = arith.constant 0 : index
    %c3 = arith.constant 3 : index
    %c0_17 = arith.constant 0 : index
    %c0_18 = arith.constant 0 : index
    %c0_19 = arith.constant 0 : index
    %20 = vector.load %arg4[%c0_16, %c3, %c0_17, %c0_18, %c0_19] : memref<1x4x4x8x8xf32, #tpu.memory_space<vmem>>, vector<1x1x4x8x8xf32>
    %21 = vector.shape_cast %20 : vector<1x1x4x8x8xf32> to vector<4x8x8xf32>
    %22 = vector.shape_cast %19 : vector<4x8x8xf32> to vector<1x1x4x8x8xf32>
    tpu.vector_store %arg4[%c0_16, %c3, %c0_17, %c0_18, %c0_19], %22 {strides = array<i32>} : memref<1x4x4x8x8xf32, #tpu.memory_space<vmem>>, vector<1x1x4x8x8xf32>,
    return
  }
  func.func @transform_0(%arg0: i32, %arg1: i32, %arg2: i32) -> (i32, i32, i32, i32) {
    %c0_i32 = arith.constant 0 : i32
    %c0_i32_0 = arith.constant 0 : i32
    return %arg0, %arg1, %arg2, %c0_i32 : i32, i32, i32, i32
  }
  func.func @transform_1(%arg0: i32, %arg1: i32, %arg2: i32) -> (i32, i32, i32, i32, i32) {
    %c0_i32 = arith.constant 0 : i32
    %c0_i32_0 = arith.constant 0 : i32
    %c0_i32_1 = arith.constant 0 : i32
    return %arg0, %c0_i32, %arg1, %arg2, %c0_i32_0 : i32, i32, i32, i32, i32
  }
}

</mosaic_0001>

<llo_original>
// kernel: space_to_depth.1
$region0: #{space_to_depth.1}
  #allocation0 [shape = 'u32[]', space=smem, size = 0x4, offset = 0x4, fixed_abs, tag = 'smem constant byte address 0x4 - core index']
  #allocation1 [shape = 'u32[144,128]{1,0:T(1,128)}', space=vmem, size = 0x12000, scoped, tag = 'internal scratch']
  %s0 = inlined_call_operand.hbm [shape: f32[2,4,16,16], index: 0, kind: input, shape index: {}]
  %s1 = inlined_call_operand.vmem [shape: f32[2,4,4,8,8], index: 1, kind: output, shape index: {}]
  %s2 = sld [smem:[#allocation0]]
  $region41: #{space_to_depth.1} parent=0
    _
  %s4 = ssub.s32 1, %s2
  %s5 = scalar_select 0, %s4, %s2
  $region1: #{space_to_depth.1} parent=0
    #allocation2 [shape = 'u8[65536]{0}', space=vmem, size = 0x10000, scoped, tag = 'input window, operand 0']
    #allocation3 [shape = 's32[2]{0}', space=sflag, size = 0x8, scoped, tag = 'scoped memory for space_to_depth.1']
    %6 = vsyncpa [#allocation3], 0
    %s7 = scalar_lea.sflag [#allocation3], 1
    %8 = vsyncpa %s7, 0
    loop: start=0, step=1, limit=4
    $region2: #{space_to_depth.1} parent=1 // loop_pre_header
      _
    $region3: #{space_to_depth.1} parent=1 // loop_header
      %s10 = sphi 0, %s14
      %p11 = scmp.ge.s32.totalorder %s10, 4
      %s17 = sphi 0, %s36
      %s18 = sphi 0, %s32
      %s19 = sphi 0, %s28
      %s20 = sphi 0, %s17
      %s21 = sphi 0, %s18
      %s22 = sphi 0, %s19
      %s23 = sphi 0, %s20
      %s24 = sphi 0, %s21
      %s25 = sphi 0, %s22
      %s43 = sphi 0, %s45
      %s46 = sphi 0, %s43
      %s47 = sphi 0, %s46
      %s63 = sphi 0, %s47
      %s73 = sphi 0, %s75
      %s76 = sphi 0, %s73
      %s77 = sphi 0, %s76
      %s93 = sphi 0, %s77
    $region4: #{space_to_depth.1} parent=1 // loop_header_branch
      %13 = sbr.rel (%p11) target = $region8
    $region5: #{space_to_depth.1} parent=1 // loop_body
      %s15 = ssub.s32 %s10, 1
      %s16 = ssub.s32 %s10, 2
      %s26 = sadd.s32 1, %s19
      %p27 = scmp.ge.s32.totalorder %s26, 1
      %s28 = scalar_select %p27, 0, %s26
      %s29 = sadd.s32 1, %s18
      %s30 = scalar_select %p27, %s29, %s18
      %p31 = scmp.ge.s32.totalorder %s30, 1
      %s32 = scalar_select %p31, 0, %s30
      %s33 = sadd.s32 1, %s17
      %s34 = scalar_select %p31, %s33, %s17
      %p35 = scmp.ge.s32.totalorder %s34, 2
      %s36 = scalar_select %p35, 0, %s34
      %s37 = ssub.s32 %s17, %s36
      %s38 = ssub.s32 %s18, %s32
      %s39 = sor.u32 %s37, %s38
      %s40 = ssub.s32 %s19, %s28
      %s41 = sor.u32 %s39, %s40
      %p42 = scmp.eq.s32.totalorder %s41, 0
      %s44 = sadd.s32 %s43, 1
      %s45 = scalar_select %p42, %s43, %s44
      %p48 = pneg %p42
      %p49 = scmp.eq.s32.totalorder %s10, 1
      %p50 = por %p48, %p49
      %p51 = scmp.ne.s32.totalorder %s43, %s46
      %p52 = scmp.eq.s32.totalorder %s10, 0
      %p53 = por %p51, %p52
      %p54 = scmp.ne.s32.totalorder %s43, %s46
      %p55 = scmp.eq.s32.totalorder %s15, 1
      %p56 = por %p54, %p55
      %p57 = scmp.ne.s32.totalorder %s46, %s47
      %p58 = scmp.eq.s32.totalorder %s15, 0
      %p59 = por %p57, %p58
      %p60 = scmp.ne.s32.totalorder %s46, %s47
      %p61 = scmp.eq.s32.totalorder %s16, 1
      %p62 = por %p60, %p61
      %p64 = scmp.ne.s32.totalorder %s47, %s63
      %p65 = scmp.eq.s32.totalorder %s16, 0
      %p66 = por %p64, %p65
      %s67 = ssub.s32 %s17, %s36
      %s68 = ssub.s32 %s18, %s32
      %s69 = sor.u32 %s67, %s68
      %s70 = ssub.s32 %s19, %s28
      %s71 = sor.u32 %s69, %s70
      %p72 = scmp.eq.s32.totalorder %s71, 0
      %s74 = sadd.s32 %s73, 1
      %s75 = scalar_select %p72, %s73, %s74
      %p78 = pneg %p72
      %p79 = scmp.eq.s32.totalorder %s10, 1
      %p80 = por %p78, %p79
      %p81 = scmp.ne.s32.totalorder %s73, %s76
      %p82 = scmp.eq.s32.totalorder %s10, 0
      %p83 = por %p81, %p82
      %p84 = scmp.ne.s32.totalorder %s73, %s76
      %p85 = scmp.eq.s32.totalorder %s15, 1
      %p86 = por %p84, %p85
      %p87 = scmp.ne.s32.totalorder %s76, %s77
      %p88 = scmp.eq.s32.totalorder %s15, 0
      %p89 = por %p87, %p88
      %p90 = scmp.ne.s32.totalorder %s76, %s77
      %p91 = scmp.eq.s32.totalorder %s16, 1
      %p92 = por %p90, %p91
      %p94 = scmp.ne.s32.totalorder %s77, %s93
      %p95 = scmp.eq.s32.totalorder %s16, 0
      %p96 = por %p94, %p95
      %p97 = scmp.le.s32.totalorder 1, %s10
      %p98 = scmp.lt.s32.totalorder %s10, 3
      %p99 = pnand %p97, %p98
      %p100 = pneg %p99
      // Predicated region
      $region9: #{space_to_depth.1} parent=5 // pred_check
        _
      $region10: #{space_to_depth.1} parent=5 // pred_check_branch
        %102 = sbr.rel (%p99) target = $region12
      $region11: #{space_to_depth.1} parent=5 // pred_region
        %s103 = ssub.s32 %s10, 1
      $region12: #{space_to_depth.1} parent=5 // pred_fallthru
        _
      %p104 = scmp.lt.s32.totalorder %s10, 2
      // Predicated region
      $region13: #{space_to_depth.1} parent=5 // pred_check
        %p105 = pneg %p104
      $region14: #{space_to_depth.1} parent=5 // pred_check_branch
        %107 = sbr.rel (%p105) target = $region16
      $region15: #{space_to_depth.1} parent=5 // pred_region
        // Predicated region
        $region17: #{space_to_depth.1} parent=15 // pred_check
          %p108 = pneg %p53
        $region18: #{space_to_depth.1} parent=15 // pred_check_branch
          %110 = sbr.rel (%p108) target = $region20
        $region19: #{space_to_depth.1} parent=15 // pred_region
          %s111 = sand.u32 %s43, 1
          %s112 = scalar_lea.sflag [#allocation3], %s111
          %s113 = sand.u32 %s43, 1
          %s114 = smul.addr %s113, 64
          %s115 = scalar_lea.vmem [#allocation2], %s114
          %s116 = smul.u32 4, %s18
          %s117 = smul.u32 2, %s19
          %s119 = ssub.s32 1024, 1024
          %120 = vsyncadd %s112, %s119
          %s121 = smul.addr %s116, 2
          %s122 = sadd.s32 %s117, %s121
          %s123 = smul.addr %s17, 8
          %s124 = sadd.s32 %s122, %s123
          %s125 = smul.addr %s124, 128
          %s126 = scalar_lea.hbm %s0, %s125
          %s127 = sshll.u32 %s115, 4
          %s128 = int_to_ptr.vmem [resolvable:$true] %s127
          %133 = dma.hbm_to_vmem [thread:$0]  %s126, 1024, %s128, %s112, 128, 128, 8
        $region20: #{space_to_depth.1} parent=15 // pred_fallthru
          _
      $region16: #{space_to_depth.1} parent=5 // pred_fallthru
        _
      %p134 = scmp.le.s32.totalorder 1, %s10
      %p135 = scmp.lt.s32.totalorder %s10, 3
      %p136 = pnand %p134, %p135
      %p137 = pneg %p136
      // Predicated region
      $region21: #{space_to_depth.1} parent=5 // pred_check
        _
      $region22: #{space_to_depth.1} parent=5 // pred_check_branch
        %139 = sbr.rel (%p136) target = $region24
      $region23: #{space_to_depth.1} parent=5 // pred_region
        %s140 = ssub.s32 %s10, 1
        %s141 = sand.u32 %s46, 1
        %s142 = scalar_lea.sflag [#allocation3], %s141
        %s143 = sand.u32 %s46, 1
        %s144 = smul.addr %s143, 64
        %s145 = scalar_lea.vmem [#allocation2], %s144
        // Predicated region
        $region25: #{space_to_depth.1} parent=23 // pred_check
          %p146 = pneg %p59
        $region26: #{space_to_depth.1} parent=23 // pred_check_branch
          %148 = sbr.rel (%p146) target = $region28
        $region27: #{space_to_depth.1} parent=23 // pred_region
          %149 = dma.done %s142, 1024
        $region28: #{space_to_depth.1} parent=23 // pred_fallthru
          _
        %s150 = sand.u32 %s46, 1
        %s151 = scalar_lea.sflag [#allocation3], %s150
        %s152 = sand.u32 %s46, 1
        %s153 = smul.addr %s152, 64
        %s154 = scalar_lea.vmem [#allocation2], %s153
        %p155 = pneg %p59
        %p156 = pneg %p56
        %p157 = pneg %p89
        %p158 = pneg %p86
        %s159 = smul.u32 4, %s21
        %p160 = scmp.lt.s32.totalorder %s20, 1
        %s161 = scalar_select %p160, %s20, 1
        %p162 = scmp.lt.s32.totalorder %s159, 3
        %s163 = scalar_select %p162, %s159, 3
        %p164 = scmp.lt.s32.totalorder %s22, 0
        %s165 = scalar_select %p164, %s22, 0
        %s166 = sadd.s32 %s165, %s163
        %s167 = smul.addr %s161, 16
        %s168 = sadd.s32 %s166, %s167
        %s169 = smul.addr %s168, 8
        %s170 = scalar_lea.vmem %s1, %s169
        %s171 = smul.u32 4, %s21
        %s172 = smul.u32 2, %s22
        %s173 = smul.u32 4, %s21
        %p174 = scmp.lt.s32.totalorder %s20, 1
        %s175 = scalar_select %p174, %s20, 1
        %p176 = scmp.lt.s32.totalorder %s173, 3
        %s177 = scalar_select %p176, %s173, 3
        %p178 = scmp.lt.s32.totalorder %s22, 0
        %s179 = scalar_select %p178, %s22, 0
        %s180 = sadd.s32 %s179, %s177
        %s181 = smul.addr %s175, 16
        %s182 = sadd.s32 %s180, %s181
        %s183 = smul.addr %s182, 8
        %s184 = scalar_lea.vmem %s1, %s183
        %s185 = smul.u32 4, %s21
        %v186 = vld [vmem:[%s145] sm:$0xff]
        %v187 = vld [vmem:[%s145 + $0x8] sm:$0xff]
        %v188 = vld [vmem:[%s145 + $0x10] sm:$0xff]
        %v189 = vld [vmem:[%s145 + $0x18] sm:$0xff]
        %v190 = vld [vmem:[%s145 + $0x20] sm:$0xff]
        %v191 = vld [vmem:[%s145 + $0x28] sm:$0xff]
        %v192 = vld [vmem:[%s145 + $0x30] sm:$0xff]
        %v193 = vld [vmem:[%s145 + $0x38] sm:$0xff]
        %202 = vrot.lane.b32.xlu0 %v186, 126
        %v203 = vpop.permute.xlu0 %202
        %204 = vrot.lane.b32.xlu0 %v187, 126
        %v205 = vpop.permute.xlu0 %204
        %206 = vrot.lane.b32.xlu0 %v188, 126
        %v207 = vpop.permute.xlu0 %206
        %208 = vrot.lane.b32.xlu0 %v189, 126
        %v209 = vpop.permute.xlu0 %208
        %210 = vrot.lane.b32.xlu0 %v190, 126
        %v211 = vpop.permute.xlu0 %210
        %212 = vrot.lane.b32.xlu0 %v191, 126
        %v213 = vpop.permute.xlu0 %212
        %214 = vrot.lane.b32.xlu0 %v192, 126
        %v215 = vpop.permute.xlu0 %214
        %216 = vrot.lane.b32.xlu0 %v193, 126
        %v217 = vpop.permute.xlu0 %216
        %226 = vrot.lane.b32.xlu0 %v186, 124
        %v227 = vpop.permute.xlu0 %226
        %228 = vrot.lane.b32.xlu0 %v187, 124
        %v229 = vpop.permute.xlu0 %228
        %230 = vrot.lane.b32.xlu0 %v188, 124
        %v231 = vpop.permute.xlu0 %230
        %232 = vrot.lane.b32.xlu0 %v189, 124
        %v233 = vpop.permute.xlu0 %232
        %234 = vrot.lane.b32.xlu0 %v190, 124
        %v235 = vpop.permute.xlu0 %234
        %236 = vrot.lane.b32.xlu0 %v191, 124
        %v237 = vpop.permute.xlu0 %236
        %238 = vrot.lane.b32.xlu0 %v192, 124
        %v239 = vpop.permute.xlu0 %238
        %240 = vrot.lane.b32.xlu0 %v193, 124
        %v241 = vpop.permute.xlu0 %240
        %250 = vrot.lane.b32.xlu0 %v186, 122
        %v251 = vpop.permute.xlu0 %250
        %252 = vrot.lane.b32.xlu0 %v187, 122
        %v253 = vpop.permute.xlu0 %252
        %254 = vrot.lane.b32.xlu0 %v188, 122
        %v255 = vpop.permute.xlu0 %254
        %256 = vrot.lane.b32.xlu0 %v189, 122
        %v257 = vpop.permute.xlu0 %256
        %258 = vrot.lane.b32.xlu0 %v190, 122
        %v259 = vpop.permute.xlu0 %258
        %260 = vrot.lane.b32.xlu0 %v191, 122
        %v261 = vpop.permute.xlu0 %260
        %262 = vrot.lane.b32.xlu0 %v192, 122
        %v263 = vpop.permute.xlu0 %262
        %264 = vrot.lane.b32.xlu0 %v193, 122
        %v265 = vpop.permute.xlu0 %264
        %274 = vrot.lane.b32.xlu0 %v186, 120
        %v275 = vpop.permute.xlu0 %274
        %276 = vrot.lane.b32.xlu0 %v187, 120
        %v277 = vpop.permute.xlu0 %276
        %278 = vrot.lane.b32.xlu0 %v188, 120
        %v279 = vpop.permute.xlu0 %278
        %280 = vrot.lane.b32.xlu0 %v189, 120
        %v281 = vpop.permute.xlu0 %280
        %282 = vrot.lane.b32.xlu0 %v190, 120
        %v283 = vpop.permute.xlu0 %282
        %284 = vrot.lane.b32.xlu0 %v191, 120
        %v285 = vpop.permute.xlu0 %284
        %286 = vrot.lane.b32.xlu0 %v192, 120
        %v287 = vpop.permute.xlu0 %286
        %288 = vrot.lane.b32.xlu0 %v193, 120
        %v289 = vpop.permute.xlu0 %288
        %298 = vrot.lane.b32.xlu0 %v186, 118
        %v299 = vpop.permute.xlu0 %298
        %300 = vrot.lane.b32.xlu0 %v187, 118
        %v301 = vpop.permute.xlu0 %300
        %302 = vrot.lane.b32.xlu0 %v188, 118
        %v303 = vpop.permute.xlu0 %302
        %304 = vrot.lane.b32.xlu0 %v189, 118
        %v305 = vpop.permute.xlu0 %304
        %306 = vrot.lane.b32.xlu0 %v190, 118
        %v307 = vpop.permute.xlu0 %306
        %308 = vrot.lane.b32.xlu0 %v191, 118
        %v309 = vpop.permute.xlu0 %308
        %310 = vrot.lane.b32.xlu0 %v192, 118
        %v311 = vpop.permute.xlu0 %310
        %312 = vrot.lane.b32.xlu0 %v193, 118
        %v313 = vpop.permute.xlu0 %312
        %322 = vrot.lane.b32.xlu0 %v186, 116
        %v323 = vpop.permute.xlu0 %322
        %324 = vrot.lane.b32.xlu0 %v187, 116
        %v325 = vpop.permute.xlu0 %324
        %326 = vrot.lane.b32.xlu0 %v188, 116
        %v327 = vpop.permute.xlu0 %326
        %328 = vrot.lane.b32.xlu0 %v189, 116
        %v329 = vpop.permute.xlu0 %328
        %330 = vrot.lane.b32.xlu0 %v190, 116
        %v331 = vpop.permute.xlu0 %330
        %332 = vrot.lane.b32.xlu0 %v191, 116
        %v333 = vpop.permute.xlu0 %332
        %334 = vrot.lane.b32.xlu0 %v192, 116
        %v335 = vpop.permute.xlu0 %334
        %336 = vrot.lane.b32.xlu0 %v193, 116
        %v337 = vpop.permute.xlu0 %336
        %346 = vrot.lane.b32.xlu0 %v186, 114
        %v347 = vpop.permute.xlu0 %346
        %348 = vrot.lane.b32.xlu0 %v187, 114
        %v349 = vpop.permute.xlu0 %348
        %350 = vrot.lane.b32.xlu0 %v188, 114
        %v351 = vpop.permute.xlu0 %350
        %352 = vrot.lane.b32.xlu0 %v189, 114
        %v353 = vpop.permute.xlu0 %352
        %354 = vrot.lane.b32.xlu0 %v190, 114
        %v355 = vpop.permute.xlu0 %354
        %356 = vrot.lane.b32.xlu0 %v191, 114
        %v357 = vpop.permute.xlu0 %356
        %358 = vrot.lane.b32.xlu0 %v192, 114
        %v359 = vpop.permute.xlu0 %358
        %360 = vrot.lane.b32.xlu0 %v193, 114
        %v361 = vpop.permute.xlu0 %360
        %v370 = vcombine.low %v186, %v227
        %v371 = vcombine.high %v186, %v227
        %v373 = vunpack.c.l.s4 1983009808
        %v374 = vunpack.c.0.s8 %v373
        %v375 = vlaneseq
        %v376 = vshrl.u32 %v375, 7
        %v377 = vsub.s32 %v374, %v376
        %v378 = vrot.slane %v370, %v377
        %v380 = vunpack.c.l.s4 1983009808
        %v381 = vunpack.c.0.s8 %v380
        %v382 = vlaneseq
        %v383 = vshrl.u32 %v382, 7
        %v384 = vsub.s32 %v381, %v383
        %v385 = vrot.slane %v371, %v384
        %v386 = vcombine.low %v203, %v251
        %v387 = vcombine.high %v203, %v251
        %v389 = vunpack.c.l.s4 1983009808
        %v390 = vunpack.c.0.s8 %v389
        %v391 = vlaneseq
        %v392 = vshrl.u32 %v391, 7
        %v393 = vsub.s32 %v390, %v392
        %v394 = vrot.slane %v386, %v393
        %v396 = vunpack.c.l.s4 1983009808
        %v397 = vunpack.c.0.s8 %v396
        %v398 = vlaneseq
        %v399 = vshrl.u32 %v398, 7
        %v400 = vsub.s32 %v397, %v399
        %v401 = vrot.slane %v387, %v400
        %v402 = vcombine.low %v275, %v323
        %v403 = vcombine.high %v275, %v323
        %v405 = vunpack.c.l.s4 1983009808
        %v406 = vunpack.c.0.s8 %v405
        %v407 = vlaneseq
        %v408 = vshrl.u32 %v407, 7
        %v409 = vsub.s32 %v406, %v408
        %v410 = vrot.slane %v402, %v409
        %v412 = vunpack.c.l.s4 1983009808
        %v413 = vunpack.c.0.s8 %v412
        %v414 = vlaneseq
        %v415 = vshrl.u32 %v414, 7
        %v416 = vsub.s32 %v413, %v415
        %v417 = vrot.slane %v403, %v416
        %v418 = vcombine.low %v299, %v347
        %v419 = vcombine.high %v299, %v347
        %v421 = vunpack.c.l.s4 1983009808
        %v422 = vunpack.c.0.s8 %v421
        %v423 = vlaneseq
        %v424 = vshrl.u32 %v423, 7
        %v425 = vsub.s32 %v422, %v424
        %v426 = vrot.slane %v418, %v425
        %v428 = vunpack.c.l.s4 1983009808
        %v429 = vunpack.c.0.s8 %v428
        %v430 = vlaneseq
        %v431 = vshrl.u32 %v430, 7
        %v432 = vsub.s32 %v429, %v431
        %v433 = vrot.slane %v419, %v432
        %v434 = vcombine.low %v378, %v394
        %v435 = vcombine.high %v378, %v394
        %v437 = vunpack.c.l.s4 1934713408
        %v438 = vunpack.c.0.s8 %v437
        %v439 = vlaneseq
        %v440 = vshrl.u32 %v439, 7
        %v441 = vsub.s32 %v438, %v440
        %v442 = vrot.slane %v434, %v441
        %v444 = vunpack.c.l.s4 1934713408
        %v445 = vunpack.c.0.s8 %v444
        %v446 = vlaneseq
        %v447 = vshrl.u32 %v446, 7
        %v448 = vsub.s32 %v445, %v447
        %v449 = vrot.slane %v435, %v448
        %v450 = vcombine.low %v385, %v401
        %v451 = vcombine.high %v385, %v401
        %v453 = vunpack.c.l.s4 1934713408
        %v454 = vunpack.c.0.s8 %v453
        %v455 = vlaneseq
        %v456 = vshrl.u32 %v455, 7
        %v457 = vsub.s32 %v454, %v456
        %v458 = vrot.slane %v450, %v457
        %v460 = vunpack.c.l.s4 1934713408
        %v461 = vunpack.c.0.s8 %v460
        %v462 = vlaneseq
        %v463 = vshrl.u32 %v462, 7
        %v464 = vsub.s32 %v461, %v463
        %v465 = vrot.slane %v451, %v464
        %v466 = vcombine.low %v410, %v426
        %v467 = vcombine.high %v410, %v426
        %v469 = vunpack.c.l.s4 1934713408
        %v470 = vunpack.c.0.s8 %v469
        %v471 = vlaneseq
        %v472 = vshrl.u32 %v471, 7
        %v473 = vsub.s32 %v470, %v472
        %v474 = vrot.slane %v466, %v473
        %v476 = vunpack.c.l.s4 1934713408
        %v477 = vunpack.c.0.s8 %v476
        %v478 = vlaneseq
        %v479 = vshrl.u32 %v478, 7
        %v480 = vsub.s32 %v477, %v479
        %v481 = vrot.slane %v467, %v480
        %v482 = vcombine.low %v417, %v433
        %v483 = vcombine.high %v417, %v433
        %v485 = vunpack.c.l.s4 1934713408
        %v486 = vunpack.c.0.s8 %v485
        %v487 = vlaneseq
        %v488 = vshrl.u32 %v487, 7
        %v489 = vsub.s32 %v486, %v488
        %v490 = vrot.slane %v482, %v489
        %v492 = vunpack.c.l.s4 1934713408
        %v493 = vunpack.c.0.s8 %v492
        %v494 = vlaneseq
        %v495 = vshrl.u32 %v494, 7
        %v496 = vsub.s32 %v493, %v495
        %v497 = vrot.slane %v483, %v496
        %v498 = vcombine.low %v442, %v474
        %v499 = vcombine.high %v442, %v474
        %v500 = vcombine.low %v449, %v481
        %v501 = vcombine.high %v449, %v481
        %v502 = vcombine.low %v458, %v490
        %v503 = vcombine.high %v458, %v490
        %v504 = vcombine.low %v465, %v497
        %v505 = vcombine.high %v465, %v497
        %v506 = vcombine.low %v187, %v229
        %v507 = vcombine.high %v187, %v229
        %v509 = vunpack.c.l.s4 1983009808
        %v510 = vunpack.c.0.s8 %v509
        %v511 = vlaneseq
        %v512 = vshrl.u32 %v511, 7
        %v513 = vsub.s32 %v510, %v512
        %v514 = vrot.slane %v506, %v513
        %v516 = vunpack.c.l.s4 1983009808
        %v517 = vunpack.c.0.s8 %v516
        %v518 = vlaneseq
        %v519 = vshrl.u32 %v518, 7
        %v520 = vsub.s32 %v517, %v519
        %v521 = vrot.slane %v507, %v520
        %v522 = vcombine.low %v205, %v253
        %v523 = vcombine.high %v205, %v253
        %v525 = vunpack.c.l.s4 1983009808
        %v526 = vunpack.c.0.s8 %v525
        %v527 = vlaneseq
        %v528 = vshrl.u32 %v527, 7
        %v529 = vsub.s32 %v526, %v528
        %v530 = vrot.slane %v522, %v529
        %v532 = vunpack.c.l.s4 1983009808
        %v533 = vunpack.c.0.s8 %v532
        %v534 = vlaneseq
        %v535 = vshrl.u32 %v534, 7
        %v536 = vsub.s32 %v533, %v535
        %v537 = vrot.slane %v523, %v536
        %v538 = vcombine.low %v277, %v325
        %v539 = vcombine.high %v277, %v325
        %v541 = vunpack.c.l.s4 1983009808
        %v542 = vunpack.c.0.s8 %v541
        %v543 = vlaneseq
        %v544 = vshrl.u32 %v543, 7
        %v545 = vsub.s32 %v542, %v544
        %v546 = vrot.slane %v538, %v545
        %v548 = vunpack.c.l.s4 1983009808
        %v549 = vunpack.c.0.s8 %v548
        %v550 = vlaneseq
        %v551 = vshrl.u32 %v550, 7
        %v552 = vsub.s32 %v549, %v551
        %v553 = vrot.slane %v539, %v552
        %v554 = vcombine.low %v301, %v349
        %v555 = vcombine.high %v301, %v349
        %v557 = vunpack.c.l.s4 1983009808
        %v558 = vunpack.c.0.s8 %v557
        %v559 = vlaneseq
        %v560 = vshrl.u32 %v559, 7
        %v561 = vsub.s32 %v558, %v560
        %v562 = vrot.slane %v554, %v561
        %v564 = vunpack.c.l.s4 1983009808
        %v565 = vunpack.c.0.s8 %v564
        %v566 = vlaneseq
        %v567 = vshrl.u32 %v566, 7
        %v568 = vsub.s32 %v565, %v567
        %v569 = vrot.slane %v555, %v568
        %v570 = vcombine.low %v514, %v530
        %v571 = vcombine.high %v514, %v530
        %v573 = vunpack.c.l.s4 1934713408
        %v574 = vunpack.c.0.s8 %v573
        %v575 = vlaneseq
        %v576 = vshrl.u32 %v575, 7
        %v577 = vsub.s32 %v574, %v576
        %v578 = vrot.slane %v570, %v577
        %v580 = vunpack.c.l.s4 1934713408
        %v581 = vunpack.c.0.s8 %v580
        %v582 = vlaneseq
        %v583 = vshrl.u32 %v582, 7
        %v584 = vsub.s32 %v581, %v583
        %v585 = vrot.slane %v571, %v584
        %v586 = vcombine.low %v521, %v537
        %v587 = vcombine.high %v521, %v537
        %v589 = vunpack.c.l.s4 1934713408
        %v590 = vunpack.c.0.s8 %v589
        %v591 = vlaneseq
        %v592 = vshrl.u32 %v591, 7
        %v593 = vsub.s32 %v590, %v592
        %v594 = vrot.slane %v586, %v593
        %v596 = vunpack.c.l.s4 1934713408
        %v597 = vunpack.c.0.s8 %v596
        %v598 = vlaneseq
        %v599 = vshrl.u32 %v598, 7
        %v600 = vsub.s32 %v597, %v599
        %v601 = vrot.slane %v587, %v600
        %v602 = vcombine.low %v546, %v562
        %v603 = vcombine.high %v546, %v562
        %v605 = vunpack.c.l.s4 1934713408
        %v606 = vunpack.c.0.s8 %v605
        %v607 = vlaneseq
        %v608 = vshrl.u32 %v607, 7
        %v609 = vsub.s32 %v606, %v608
        %v610 = vrot.slane %v602, %v609
        %v612 = vunpack.c.l.s4 1934713408
        %v613 = vunpack.c.0.s8 %v612
        %v614 = vlaneseq
        %v615 = vshrl.u32 %v614, 7
        %v616 = vsub.s32 %v613, %v615
        %v617 = vrot.slane %v603, %v616
        %v618 = vcombine.low %v553, %v569
        %v619 = vcombine.high %v553, %v569
        %v621 = vunpack.c.l.s4 1934713408
        %v622 = vunpack.c.0.s8 %v621
        %v623 = vlaneseq
        %v624 = vshrl.u32 %v623, 7
        %v625 = vsub.s32 %v622, %v624
        %v626 = vrot.slane %v618, %v625
        %v628 = vunpack.c.l.s4 1934713408
        %v629 = vunpack.c.0.s8 %v628
        %v630 = vlaneseq
        %v631 = vshrl.u32 %v630, 7
        %v632 = vsub.s32 %v629, %v631
        %v633 = vrot.slane %v619, %v632
        %v634 = vcombine.low %v578, %v610
        %v635 = vcombine.high %v578, %v610
        %v636 = vcombine.low %v585, %v617
        %v637 = vcombine.high %v585, %v617
        %v638 = vcombine.low %v594, %v626
        %v639 = vcombine.high %v594, %v626
        %v640 = vcombine.low %v601, %v633
        %v641 = vcombine.high %v601, %v633
        %v642 = vcombine.low %v188, %v231
        %v643 = vcombine.high %v188, %v231
        %v645 = vunpack.c.l.s4 1983009808
        %v646 = vunpack.c.0.s8 %v645
        %v647 = vlaneseq
        %v648 = vshrl.u32 %v647, 7
        %v649 = vsub.s32 %v646, %v648
        %v650 = vrot.slane %v642, %v649
        %v652 = vunpack.c.l.s4 1983009808
        %v653 = vunpack.c.0.s8 %v652
        %v654 = vlaneseq
        %v655 = vshrl.u32 %v654, 7
        %v656 = vsub.s32 %v653, %v655
        %v657 = vrot.slane %v643, %v656
        %v658 = vcombine.low %v207, %v255
        %v659 = vcombine.high %v207, %v255
        %v661 = vunpack.c.l.s4 1983009808
        %v662 = vunpack.c.0.s8 %v661
        %v663 = vlaneseq
        %v664 = vshrl.u32 %v663, 7
        %v665 = vsub.s32 %v662, %v664
        %v666 = vrot.slane %v658, %v665
        %v668 = vunpack.c.l.s4 1983009808
        %v669 = vunpack.c.0.s8 %v668
        %v670 = vlaneseq
        %v671 = vshrl.u32 %v670, 7
        %v672 = vsub.s32 %v669, %v671
        %v673 = vrot.slane %v659, %v672
        %v674 = vcombine.low %v279, %v327
        %v675 = vcombine.high %v279, %v327
        %v677 = vunpack.c.l.s4 1983009808
        %v678 = vunpack.c.0.s8 %v677
        %v679 = vlaneseq
        %v680 = vshrl.u32 %v679, 7
        %v681 = vsub.s32 %v678, %v680
        %v682 = vrot.slane %v674, %v681
        %v684 = vunpack.c.l.s4 1983009808
        %v685 = vunpack.c.0.s8 %v684
        %v686 = vlaneseq
        %v687 = vshrl.u32 %v686, 7
        %v688 = vsub.s32 %v685, %v687
        %v689 = vrot.slane %v675, %v688
        %v690 = vcombine.low %v303, %v351
        %v691 = vcombine.high %v303, %v351
        %v693 = vunpack.c.l.s4 1983009808
        %v694 = vunpack.c.0.s8 %v693
        %v695 = vlaneseq
        %v696 = vshrl.u32 %v695, 7
        %v697 = vsub.s32 %v694, %v696
        %v698 = vrot.slane %v690, %v697
        %v700 = vunpack.c.l.s4 1983009808
        %v701 = vunpack.c.0.s8 %v700
        %v702 = vlaneseq
        %v703 = vshrl.u32 %v702, 7
        %v704 = vsub.s32 %v701, %v703
        %v705 = vrot.slane %v691, %v704
        %v706 = vcombine.low %v650, %v666
        %v707 = vcombine.high %v650, %v666
        %v709 = vunpack.c.l.s4 1934713408
        %v710 = vunpack.c.0.s8 %v709
        %v711 = vlaneseq
        %v712 = vshrl.u32 %v711, 7
        %v713 = vsub.s32 %v710, %v712
        %v714 = vrot.slane %v706, %v713
        %v716 = vunpack.c.l.s4 1934713408
        %v717 = vunpack.c.0.s8 %v716
        %v718 = vlaneseq
        %v719 = vshrl.u32 %v718, 7
        %v720 = vsub.s32 %v717, %v719
        %v721 = vrot.slane %v707, %v720
        %v722 = vcombine.low %v657, %v673
        %v723 = vcombine.high %v657, %v673
        %v725 = vunpack.c.l.s4 1934713408
        %v726 = vunpack.c.0.s8 %v725
        %v727 = vlaneseq
        %v728 = vshrl.u32 %v727, 7
        %v729 = vsub.s32 %v726, %v728
        %v730 = vrot.slane %v722, %v729
        %v732 = vunpack.c.l.s4 1934713408
        %v733 = vunpack.c.0.s8 %v732
        %v734 = vlaneseq
        %v735 = vshrl.u32 %v734, 7
        %v736 = vsub.s32 %v733, %v735
        %v737 = vrot.slane %v723, %v736
        %v738 = vcombine.low %v682, %v698
        %v739 = vcombine.high %v682, %v698
        %v741 = vunpack.c.l.s4 1934713408
        %v742 = vunpack.c.0.s8 %v741
        %v743 = vlaneseq
        %v744 = vshrl.u32 %v743, 7
        %v745 = vsub.s32 %v742, %v744
        %v746 = vrot.slane %v738, %v745
        %v748 = vunpack.c.l.s4 1934713408
        %v749 = vunpack.c.0.s8 %v748
        %v750 = vlaneseq
        %v751 = vshrl.u32 %v750, 7
        %v752 = vsub.s32 %v749, %v751
        %v753 = vrot.slane %v739, %v752
        %v754 = vcombine.low %v689, %v705
        %v755 = vcombine.high %v689, %v705
        %v757 = vunpack.c.l.s4 1934713408
        %v758 = vunpack.c.0.s8 %v757
        %v759 = vlaneseq
        %v760 = vshrl.u32 %v759, 7
        %v761 = vsub.s32 %v758, %v760
        %v762 = vrot.slane %v754, %v761
        %v764 = vunpack.c.l.s4 1934713408
        %v765 = vunpack.c.0.s8 %v764
        %v766 = vlaneseq
        %v767 = vshrl.u32 %v766, 7
        %v768 = vsub.s32 %v765, %v767
        %v769 = vrot.slane %v755, %v768
        %v770 = vcombine.low %v714, %v746
        %v771 = vcombine.high %v714, %v746
        %v772 = vcombine.low %v721, %v753
        %v773 = vcombine.high %v721, %v753
        %v774 = vcombine.low %v730, %v762
        %v775 = vcombine.high %v730, %v762
        %v776 = vcombine.low %v737, %v769
        %v777 = vcombine.high %v737, %v769
        %v778 = vcombine.low %v189, %v233
        %v779 = vcombine.high %v189, %v233
        %v781 = vunpack.c.l.s4 1983009808
        %v782 = vunpack.c.0.s8 %v781
        %v783 = vlaneseq
        %v784 = vshrl.u32 %v783, 7
        %v785 = vsub.s32 %v782, %v784
        %v786 = vrot.slane %v778, %v785
        %v788 = vunpack.c.l.s4 1983009808
        %v789 = vunpack.c.0.s8 %v788
        %v790 = vlaneseq
        %v791 = vshrl.u32 %v790, 7
        %v792 = vsub.s32 %v789, %v791
        %v793 = vrot.slane %v779, %v792
        %v794 = vcombine.low %v209, %v257
        %v795 = vcombine.high %v209, %v257
        %v797 = vunpack.c.l.s4 1983009808
        %v798 = vunpack.c.0.s8 %v797
        %v799 = vlaneseq
        %v800 = vshrl.u32 %v799, 7
        %v801 = vsub.s32 %v798, %v800
        %v802 = vrot.slane %v794, %v801
        %v804 = vunpack.c.l.s4 1983009808
        %v805 = vunpack.c.0.s8 %v804
        %v806 = vlaneseq
        %v807 = vshrl.u32 %v806, 7
        %v808 = vsub.s32 %v805, %v807
        %v809 = vrot.slane %v795, %v808
        %v810 = vcombine.low %v281, %v329
        %v811 = vcombine.high %v281, %v329
        %v813 = vunpack.c.l.s4 1983009808
        %v814 = vunpack.c.0.s8 %v813
        %v815 = vlaneseq
        %v816 = vshrl.u32 %v815, 7
        %v817 = vsub.s32 %v814, %v816
        %v818 = vrot.slane %v810, %v817
        %v820 = vunpack.c.l.s4 1983009808
        %v821 = vunpack.c.0.s8 %v820
        %v822 = vlaneseq
        %v823 = vshrl.u32 %v822, 7
        %v824 = vsub.s32 %v821, %v823
        %v825 = vrot.slane %v811, %v824
        %v826 = vcombine.low %v305, %v353
        %v827 = vcombine.high %v305, %v353
        %v829 = vunpack.c.l.s4 1983009808
        %v830 = vunpack.c.0.s8 %v829
        %v831 = vlaneseq
        %v832 = vshrl.u32 %v831, 7
        %v833 = vsub.s32 %v830, %v832
        %v834 = vrot.slane %v826, %v833
        %v836 = vunpack.c.l.s4 1983009808
        %v837 = vunpack.c.0.s8 %v836
        %v838 = vlaneseq
        %v839 = vshrl.u32 %v838, 7
        %v840 = vsub.s32 %v837, %v839
        %v841 = vrot.slane %v827, %v840
        %v842 = vcombine.low %v786, %v802
        %v843 = vcombine.high %v786, %v802
        %v845 = vunpack.c.l.s4 1934713408
        %v846 = vunpack.c.0.s8 %v845
        %v847 = vlaneseq
        %v848 = vshrl.u32 %v847, 7
        %v849 = vsub.s32 %v846, %v848
        %v850 = vrot.slane %v842, %v849
        %v852 = vunpack.c.l.s4 1934713408
        %v853 = vunpack.c.0.s8 %v852
        %v854 = vlaneseq
        %v855 = vshrl.u32 %v854, 7
        %v856 = vsub.s32 %v853, %v855
        %v857 = vrot.slane %v843, %v856
        %v858 = vcombine.low %v793, %v809
        %v859 = vcombine.high %v793, %v809
        %v861 = vunpack.c.l.s4 1934713408
        %v862 = vunpack.c.0.s8 %v861
        %v863 = vlaneseq
        %v864 = vshrl.u32 %v863, 7
        %v865 = vsub.s32 %v862, %v864
        %v866 = vrot.slane %v858, %v865
        %v868 = vunpack.c.l.s4 1934713408
        %v869 = vunpack.c.0.s8 %v868
        %v870 = vlaneseq
        %v871 = vshrl.u32 %v870, 7
        %v872 = vsub.s32 %v869, %v871
        %v873 = vrot.slane %v859, %v872
        %v874 = vcombine.low %v818, %v834
        %v875 = vcombine.high %v818, %v834
        %v877 = vunpack.c.l.s4 1934713408
        %v878 = vunpack.c.0.s8 %v877
        %v879 = vlaneseq
        %v880 = vshrl.u32 %v879, 7
        %v881 = vsub.s32 %v878, %v880
        %v882 = vrot.slane %v874, %v881
        %v884 = vunpack.c.l.s4 1934713408
        %v885 = vunpack.c.0.s8 %v884
        %v886 = vlaneseq
        %v887 = vshrl.u32 %v886, 7
        %v888 = vsub.s32 %v885, %v887
        %v889 = vrot.slane %v875, %v888
        %v890 = vcombine.low %v825, %v841
        %v891 = vcombine.high %v825, %v841
        %v893 = vunpack.c.l.s4 1934713408
        %v894 = vunpack.c.0.s8 %v893
        %v895 = vlaneseq
        %v896 = vshrl.u32 %v895, 7
        %v897 = vsub.s32 %v894, %v896
        %v898 = vrot.slane %v890, %v897
        %v900 = vunpack.c.l.s4 1934713408
        %v901 = vunpack.c.0.s8 %v900
        %v902 = vlaneseq
        %v903 = vshrl.u32 %v902, 7
        %v904 = vsub.s32 %v901, %v903
        %v905 = vrot.slane %v891, %v904
        %v906 = vcombine.low %v850, %v882
        %v907 = vcombine.high %v850, %v882
        %v908 = vcombine.low %v857, %v889
        %v909 = vcombine.high %v857, %v889
        %v910 = vcombine.low %v866, %v898
        %v911 = vcombine.high %v866, %v898
        %v912 = vcombine.low %v873, %v905
        %v913 = vcombine.high %v873, %v905
        %v914 = vcombine.low %v190, %v235
        %v915 = vcombine.high %v190, %v235
        %v917 = vunpack.c.l.s4 1983009808
        %v918 = vunpack.c.0.s8 %v917
        %v919 = vlaneseq
        %v920 = vshrl.u32 %v919, 7
        %v921 = vsub.s32 %v918, %v920
        %v922 = vrot.slane %v914, %v921
        %v924 = vunpack.c.l.s4 1983009808
        %v925 = vunpack.c.0.s8 %v924
        %v926 = vlaneseq
        %v927 = vshrl.u32 %v926, 7
        %v928 = vsub.s32 %v925, %v927
        %v929 = vrot.slane %v915, %v928
        %v930 = vcombine.low %v211, %v259
        %v931 = vcombine.high %v211, %v259
        %v933 = vunpack.c.l.s4 1983009808
        %v934 = vunpack.c.0.s8 %v933
        %v935 = vlaneseq
        %v936 = vshrl.u32 %v935, 7
        %v937 = vsub.s32 %v934, %v936
        %v938 = vrot.slane %v930, %v937
        %v940 = vunpack.c.l.s4 1983009808
        %v941 = vunpack.c.0.s8 %v940
        %v942 = vlaneseq
        %v943 = vshrl.u32 %v942, 7
        %v944 = vsub.s32 %v941, %v943
        %v945 = vrot.slane %v931, %v944
        %v946 = vcombine.low %v283, %v331
        %v947 = vcombine.high %v283, %v331
        %v949 = vunpack.c.l.s4 1983009808
        %v950 = vunpack.c.0.s8 %v949
        %v951 = vlaneseq
        %v952 = vshrl.u32 %v951, 7
        %v953 = vsub.s32 %v950, %v952
        %v954 = vrot.slane %v946, %v953
        %v956 = vunpack.c.l.s4 1983009808
        %v957 = vunpack.c.0.s8 %v956
        %v958 = vlaneseq
        %v959 = vshrl.u32 %v958, 7
        %v960 = vsub.s32 %v957, %v959
        %v961 = vrot.slane %v947, %v960
        %v962 = vcombine.low %v307, %v355
        %v963 = vcombine.high %v307, %v355
        %v965 = vunpack.c.l.s4 1983009808
        %v966 = vunpack.c.0.s8 %v965
        %v967 = vlaneseq
        %v968 = vshrl.u32 %v967, 7
        %v969 = vsub.s32 %v966, %v968
        %v970 = vrot.slane %v962, %v969
        %v972 = vunpack.c.l.s4 1983009808
        %v973 = vunpack.c.0.s8 %v972
        %v974 = vlaneseq
        %v975 = vshrl.u32 %v974, 7
        %v976 = vsub.s32 %v973, %v975
        %v977 = vrot.slane %v963, %v976
        %v978 = vcombine.low %v922, %v938
        %v979 = vcombine.high %v922, %v938
        %v981 = vunpack.c.l.s4 1934713408
        %v982 = vunpack.c.0.s8 %v981
        %v983 = vlaneseq
        %v984 = vshrl.u32 %v983, 7
        %v985 = vsub.s32 %v982, %v984
        %v986 = vrot.slane %v978, %v985
        %v988 = vunpack.c.l.s4 1934713408
        %v989 = vunpack.c.0.s8 %v988
        %v990 = vlaneseq
        %v991 = vshrl.u32 %v990, 7
        %v992 = vsub.s32 %v989, %v991
        %v993 = vrot.slane %v979, %v992
        %v994 = vcombine.low %v929, %v945
        %v995 = vcombine.high %v929, %v945
        %v997 = vunpack.c.l.s4 1934713408
        %v998 = vunpack.c.0.s8 %v997
        %v999 = vlaneseq
        %v1000 = vshrl.u32 %v999, 7
        %v1001 = vsub.s32 %v998, %v1000
        %v1002 = vrot.slane %v994, %v1001
        %v1004 = vunpack.c.l.s4 1934713408
        %v1005 = vunpack.c.0.s8 %v1004
        %v1006 = vlaneseq
        %v1007 = vshrl.u32 %v1006, 7
        %v1008 = vsub.s32 %v1005, %v1007
        %v1009 = vrot.slane %v995, %v1008
        %v1010 = vcombine.low %v954, %v970
        %v1011 = vcombine.high %v954, %v970
        %v1013 = vunpack.c.l.s4 1934713408
        %v1014 = vunpack.c.0.s8 %v1013
        %v1015 = vlaneseq
        %v1016 = vshrl.u32 %v1015, 7
        %v1017 = vsub.s32 %v1014, %v1016
        %v1018 = vrot.slane %v1010, %v1017
        %v1020 = vunpack.c.l.s4 1934713408
        %v1021 = vunpack.c.0.s8 %v1020
        %v1022 = vlaneseq
        %v1023 = vshrl.u32 %v1022, 7
        %v1024 = vsub.s32 %v1021, %v1023
        %v1025 = vrot.slane %v1011, %v1024
        %v1026 = vcombine.low %v961, %v977
        %v1027 = vcombine.high %v961, %v977
        %v1029 = vunpack.c.l.s4 1934713408
        %v1030 = vunpack.c.0.s8 %v1029
        %v1031 = vlaneseq
        %v1032 = vshrl.u32 %v1031, 7
        %v1033 = vsub.s32 %v1030, %v1032
        %v1034 = vrot.slane %v1026, %v1033
        %v1036 = vunpack.c.l.s4 1934713408
        %v1037 = vunpack.c.0.s8 %v1036
        %v1038 = vlaneseq
        %v1039 = vshrl.u32 %v1038, 7
        %v1040 = vsub.s32 %v1037, %v1039
        %v1041 = vrot.slane %v1027, %v1040
        %v1042 = vcombine.low %v986, %v1018
        %v1043 = vcombine.high %v986, %v1018
        %v1044 = vcombine.low %v993, %v1025
        %v1045 = vcombine.high %v993, %v1025
        %v1046 = vcombine.low %v1002, %v1034
        %v1047 = vcombine.high %v1002, %v1034
        %v1048 = vcombine.low %v1009, %v1041
        %v1049 = vcombine.high %v1009, %v1041
        %v1050 = vcombine.low %v191, %v237
        %v1051 = vcombine.high %v191, %v237
        %v1053 = vunpack.c.l.s4 1983009808
        %v1054 = vunpack.c.0.s8 %v1053
        %v1055 = vlaneseq
        %v1056 = vshrl.u32 %v1055, 7
        %v1057 = vsub.s32 %v1054, %v1056
        %v1058 = vrot.slane %v1050, %v1057
        %v1060 = vunpack.c.l.s4 1983009808
        %v1061 = vunpack.c.0.s8 %v1060
        %v1062 = vlaneseq
        %v1063 = vshrl.u32 %v1062, 7
        %v1064 = vsub.s32 %v1061, %v1063
        %v1065 = vrot.slane %v1051, %v1064
        %v1066 = vcombine.low %v213, %v261
        %v1067 = vcombine.high %v213, %v261
        %v1069 = vunpack.c.l.s4 1983009808
        %v1070 = vunpack.c.0.s8 %v1069
        %v1071 = vlaneseq
        %v1072 = vshrl.u32 %v1071, 7
        %v1073 = vsub.s32 %v1070, %v1072
        %v1074 = vrot.slane %v1066, %v1073
        %v1076 = vunpack.c.l.s4 1983009808
        %v1077 = vunpack.c.0.s8 %v1076
        %v1078 = vlaneseq
        %v1079 = vshrl.u32 %v1078, 7
        %v1080 = vsub.s32 %v1077, %v1079
        %v1081 = vrot.slane %v1067, %v1080
        %v1082 = vcombine.low %v285, %v333
        %v1083 = vcombine.high %v285, %v333
        %v1085 = vunpack.c.l.s4 1983009808
        %v1086 = vunpack.c.0.s8 %v1085
        %v1087 = vlaneseq
        %v1088 = vshrl.u32 %v1087, 7
        %v1089 = vsub.s32 %v1086, %v1088
        %v1090 = vrot.slane %v1082, %v1089
        %v1092 = vunpack.c.l.s4 1983009808
        %v1093 = vunpack.c.0.s8 %v1092
        %v1094 = vlaneseq
        %v1095 = vshrl.u32 %v1094, 7
        %v1096 = vsub.s32 %v1093, %v1095
        %v1097 = vrot.slane %v1083, %v1096
        %v1098 = vcombine.low %v309, %v357
        %v1099 = vcombine.high %v309, %v357
        %v1101 = vunpack.c.l.s4 1983009808
        %v1102 = vunpack.c.0.s8 %v1101
        %v1103 = vlaneseq
        %v1104 = vshrl.u32 %v1103, 7
        %v1105 = vsub.s32 %v1102, %v1104
        %v1106 = vrot.slane %v1098, %v1105
        %v1108 = vunpack.c.l.s4 1983009808
        %v1109 = vunpack.c.0.s8 %v1108
        %v1110 = vlaneseq
        %v1111 = vshrl.u32 %v1110, 7
        %v1112 = vsub.s32 %v1109, %v1111
        %v1113 = vrot.slane %v1099, %v1112
        %v1114 = vcombine.low %v1058, %v1074
        %v1115 = vcombine.high %v1058, %v1074
        %v1117 = vunpack.c.l.s4 1934713408
        %v1118 = vunpack.c.0.s8 %v1117
        %v1119 = vlaneseq
        %v1120 = vshrl.u32 %v1119, 7
        %v1121 = vsub.s32 %v1118, %v1120
        %v1122 = vrot.slane %v1114, %v1121
        %v1124 = vunpack.c.l.s4 1934713408
        %v1125 = vunpack.c.0.s8 %v1124
        %v1126 = vlaneseq
        %v1127 = vshrl.u32 %v1126, 7
        %v1128 = vsub.s32 %v1125, %v1127
        %v1129 = vrot.slane %v1115, %v1128
        %v1130 = vcombine.low %v1065, %v1081
        %v1131 = vcombine.high %v1065, %v1081
        %v1133 = vunpack.c.l.s4 1934713408
        %v1134 = vunpack.c.0.s8 %v1133
        %v1135 = vlaneseq
        %v1136 = vshrl.u32 %v1135, 7
        %v1137 = vsub.s32 %v1134, %v1136
        %v1138 = vrot.slane %v1130, %v1137
        %v1140 = vunpack.c.l.s4 1934713408
        %v1141 = vunpack.c.0.s8 %v1140
        %v1142 = vlaneseq
        %v1143 = vshrl.u32 %v1142, 7
        %v1144 = vsub.s32 %v1141, %v1143
        %v1145 = vrot.slane %v1131, %v1144
        %v1146 = vcombine.low %v1090, %v1106
        %v1147 = vcombine.high %v1090, %v1106
        %v1149 = vunpack.c.l.s4 1934713408
        %v1150 = vunpack.c.0.s8 %v1149
        %v1151 = vlaneseq
        %v1152 = vshrl.u32 %v1151, 7
        %v1153 = vsub.s32 %v1150, %v1152
        %v1154 = vrot.slane %v1146, %v1153
        %v1156 = vunpack.c.l.s4 1934713408
        %v1157 = vunpack.c.0.s8 %v1156
        %v1158 = vlaneseq
        %v1159 = vshrl.u32 %v1158, 7
        %v1160 = vsub.s32 %v1157, %v1159
        %v1161 = vrot.slane %v1147, %v1160
        %v1162 = vcombine.low %v1097, %v1113
        %v1163 = vcombine.high %v1097, %v1113
        %v1165 = vunpack.c.l.s4 1934713408
        %v1166 = vunpack.c.0.s8 %v1165
        %v1167 = vlaneseq
        %v1168 = vshrl.u32 %v1167, 7
        %v1169 = vsub.s32 %v1166, %v1168
        %v1170 = vrot.slane %v1162, %v1169
        %v1172 = vunpack.c.l.s4 1934713408
        %v1173 = vunpack.c.0.s8 %v1172
        %v1174 = vlaneseq
        %v1175 = vshrl.u32 %v1174, 7
        %v1176 = vsub.s32 %v1173, %v1175
        %v1177 = vrot.slane %v1163, %v1176
        %v1178 = vcombine.low %v1122, %v1154
        %v1179 = vcombine.high %v1122, %v1154
        %v1180 = vcombine.low %v1129, %v1161
        %v1181 = vcombine.high %v1129, %v1161
        %v1182 = vcombine.low %v1138, %v1170
        %v1183 = vcombine.high %v1138, %v1170
        %v1184 = vcombine.low %v1145, %v1177
        %v1185 = vcombine.high %v1145, %v1177
        %v1186 = vcombine.low %v192, %v239
        %v1187 = vcombine.high %v192, %v239
        %v1189 = vunpack.c.l.s4 1983009808
        %v1190 = vunpack.c.0.s8 %v1189
        %v1191 = vlaneseq
        %v1192 = vshrl.u32 %v1191, 7
        %v1193 = vsub.s32 %v1190, %v1192
        %v1194 = vrot.slane %v1186, %v1193
        %v1196 = vunpack.c.l.s4 1983009808
        %v1197 = vunpack.c.0.s8 %v1196
        %v1198 = vlaneseq
        %v1199 = vshrl.u32 %v1198, 7
        %v1200 = vsub.s32 %v1197, %v1199
        %v1201 = vrot.slane %v1187, %v1200
        %v1202 = vcombine.low %v215, %v263
        %v1203 = vcombine.high %v215, %v263
        %v1205 = vunpack.c.l.s4 1983009808
        %v1206 = vunpack.c.0.s8 %v1205
        %v1207 = vlaneseq
        %v1208 = vshrl.u32 %v1207, 7
        %v1209 = vsub.s32 %v1206, %v1208
        %v1210 = vrot.slane %v1202, %v1209
        %v1212 = vunpack.c.l.s4 1983009808
        %v1213 = vunpack.c.0.s8 %v1212
        %v1214 = vlaneseq
        %v1215 = vshrl.u32 %v1214, 7
        %v1216 = vsub.s32 %v1213, %v1215
        %v1217 = vrot.slane %v1203, %v1216
        %v1218 = vcombine.low %v287, %v335
        %v1219 = vcombine.high %v287, %v335
        %v1221 = vunpack.c.l.s4 1983009808
        %v1222 = vunpack.c.0.s8 %v1221
        %v1223 = vlaneseq
        %v1224 = vshrl.u32 %v1223, 7
        %v1225 = vsub.s32 %v1222, %v1224
        %v1226 = vrot.slane %v1218, %v1225
        %v1228 = vunpack.c.l.s4 1983009808
        %v1229 = vunpack.c.0.s8 %v1228
        %v1230 = vlaneseq
        %v1231 = vshrl.u32 %v1230, 7
        %v1232 = vsub.s32 %v1229, %v1231
        %v1233 = vrot.slane %v1219, %v1232
        %v1234 = vcombine.low %v311, %v359
        %v1235 = vcombine.high %v311, %v359
        %v1237 = vunpack.c.l.s4 1983009808
        %v1238 = vunpack.c.0.s8 %v1237
        %v1239 = vlaneseq
        %v1240 = vshrl.u32 %v1239, 7
        %v1241 = vsub.s32 %v1238, %v1240
        %v1242 = vrot.slane %v1234, %v1241
        %v1244 = vunpack.c.l.s4 1983009808
        %v1245 = vunpack.c.0.s8 %v1244
        %v1246 = vlaneseq
        %v1247 = vshrl.u32 %v1246, 7
        %v1248 = vsub.s32 %v1245, %v1247
        %v1249 = vrot.slane %v1235, %v1248
        %v1250 = vcombine.low %v1194, %v1210
        %v1251 = vcombine.high %v1194, %v1210
        %v1253 = vunpack.c.l.s4 1934713408
        %v1254 = vunpack.c.0.s8 %v1253
        %v1255 = vlaneseq
        %v1256 = vshrl.u32 %v1255, 7
        %v1257 = vsub.s32 %v1254, %v1256
        %v1258 = vrot.slane %v1250, %v1257
        %v1260 = vunpack.c.l.s4 1934713408
        %v1261 = vunpack.c.0.s8 %v1260
        %v1262 = vlaneseq
        %v1263 = vshrl.u32 %v1262, 7
        %v1264 = vsub.s32 %v1261, %v1263
        %v1265 = vrot.slane %v1251, %v1264
        %v1266 = vcombine.low %v1201, %v1217
        %v1267 = vcombine.high %v1201, %v1217
        %v1269 = vunpack.c.l.s4 1934713408
        %v1270 = vunpack.c.0.s8 %v1269
        %v1271 = vlaneseq
        %v1272 = vshrl.u32 %v1271, 7
        %v1273 = vsub.s32 %v1270, %v1272
        %v1274 = vrot.slane %v1266, %v1273
        %v1276 = vunpack.c.l.s4 1934713408
        %v1277 = vunpack.c.0.s8 %v1276
        %v1278 = vlaneseq
        %v1279 = vshrl.u32 %v1278, 7
        %v1280 = vsub.s32 %v1277, %v1279
        %v1281 = vrot.slane %v1267, %v1280
        %v1282 = vcombine.low %v1226, %v1242
        %v1283 = vcombine.high %v1226, %v1242
        %v1285 = vunpack.c.l.s4 1934713408
        %v1286 = vunpack.c.0.s8 %v1285
        %v1287 = vlaneseq
        %v1288 = vshrl.u32 %v1287, 7
        %v1289 = vsub.s32 %v1286, %v1288
        %v1290 = vrot.slane %v1282, %v1289
        %v1292 = vunpack.c.l.s4 1934713408
        %v1293 = vunpack.c.0.s8 %v1292
        %v1294 = vlaneseq
        %v1295 = vshrl.u32 %v1294, 7
        %v1296 = vsub.s32 %v1293, %v1295
        %v1297 = vrot.slane %v1283, %v1296
        %v1298 = vcombine.low %v1233, %v1249
        %v1299 = vcombine.high %v1233, %v1249
        %v1301 = vunpack.c.l.s4 1934713408
        %v1302 = vunpack.c.0.s8 %v1301
        %v1303 = vlaneseq
        %v1304 = vshrl.u32 %v1303, 7
        %v1305 = vsub.s32 %v1302, %v1304
        %v1306 = vrot.slane %v1298, %v1305
        %v1308 = vunpack.c.l.s4 1934713408
        %v1309 = vunpack.c.0.s8 %v1308
        %v1310 = vlaneseq
        %v1311 = vshrl.u32 %v1310, 7
        %v1312 = vsub.s32 %v1309, %v1311
        %v1313 = vrot.slane %v1299, %v1312
        %v1314 = vcombine.low %v1258, %v1290
        %v1315 = vcombine.high %v1258, %v1290
        %v1316 = vcombine.low %v1265, %v1297
        %v1317 = vcombine.high %v1265, %v1297
        %v1318 = vcombine.low %v1274, %v1306
        %v1319 = vcombine.high %v1274, %v1306
        %v1320 = vcombine.low %v1281, %v1313
        %v1321 = vcombine.high %v1281, %v1313
        %v1322 = vcombine.low %v193, %v241
        %v1323 = vcombine.high %v193, %v241
        %v1325 = vunpack.c.l.s4 1983009808
        %v1326 = vunpack.c.0.s8 %v1325
        %v1327 = vlaneseq
        %v1328 = vshrl.u32 %v1327, 7
        %v1329 = vsub.s32 %v1326, %v1328
        %v1330 = vrot.slane %v1322, %v1329
        %v1332 = vunpack.c.l.s4 1983009808
        %v1333 = vunpack.c.0.s8 %v1332
        %v1334 = vlaneseq
        %v1335 = vshrl.u32 %v1334, 7
        %v1336 = vsub.s32 %v1333, %v1335
        %v1337 = vrot.slane %v1323, %v1336
        %v1338 = vcombine.low %v217, %v265
        %v1339 = vcombine.high %v217, %v265
        %v1341 = vunpack.c.l.s4 1983009808
        %v1342 = vunpack.c.0.s8 %v1341
        %v1343 = vlaneseq
        %v1344 = vshrl.u32 %v1343, 7
        %v1345 = vsub.s32 %v1342, %v1344
        %v1346 = vrot.slane %v1338, %v1345
        %v1348 = vunpack.c.l.s4 1983009808
        %v1349 = vunpack.c.0.s8 %v1348
        %v1350 = vlaneseq
        %v1351 = vshrl.u32 %v1350, 7
        %v1352 = vsub.s32 %v1349, %v1351
        %v1353 = vrot.slane %v1339, %v1352
        %v1354 = vcombine.low %v289, %v337
        %v1355 = vcombine.high %v289, %v337
        %v1357 = vunpack.c.l.s4 1983009808
        %v1358 = vunpack.c.0.s8 %v1357
        %v1359 = vlaneseq
        %v1360 = vshrl.u32 %v1359, 7
        %v1361 = vsub.s32 %v1358, %v1360
        %v1362 = vrot.slane %v1354, %v1361
        %v1364 = vunpack.c.l.s4 1983009808
        %v1365 = vunpack.c.0.s8 %v1364
        %v1366 = vlaneseq
        %v1367 = vshrl.u32 %v1366, 7
        %v1368 = vsub.s32 %v1365, %v1367
        %v1369 = vrot.slane %v1355, %v1368
        %v1370 = vcombine.low %v313, %v361
        %v1371 = vcombine.high %v313, %v361
        %v1373 = vunpack.c.l.s4 1983009808
        %v1374 = vunpack.c.0.s8 %v1373
        %v1375 = vlaneseq
        %v1376 = vshrl.u32 %v1375, 7
        %v1377 = vsub.s32 %v1374, %v1376
        %v1378 = vrot.slane %v1370, %v1377
        %v1380 = vunpack.c.l.s4 1983009808
        %v1381 = vunpack.c.0.s8 %v1380
        %v1382 = vlaneseq
        %v1383 = vshrl.u32 %v1382, 7
        %v1384 = vsub.s32 %v1381, %v1383
        %v1385 = vrot.slane %v1371, %v1384
        %v1386 = vcombine.low %v1330, %v1346
        %v1387 = vcombine.high %v1330, %v1346
        %v1389 = vunpack.c.l.s4 1934713408
        %v1390 = vunpack.c.0.s8 %v1389
        %v1391 = vlaneseq
        %v1392 = vshrl.u32 %v1391, 7
        %v1393 = vsub.s32 %v1390, %v1392
        %v1394 = vrot.slane %v1386, %v1393
        %v1396 = vunpack.c.l.s4 1934713408
        %v1397 = vunpack.c.0.s8 %v1396
        %v1398 = vlaneseq
        %v1399 = vshrl.u32 %v1398, 7
        %v1400 = vsub.s32 %v1397, %v1399
        %v1401 = vrot.slane %v1387, %v1400
        %v1402 = vcombine.low %v1337, %v1353
        %v1403 = vcombine.high %v1337, %v1353
        %v1405 = vunpack.c.l.s4 1934713408
        %v1406 = vunpack.c.0.s8 %v1405
        %v1407 = vlaneseq
        %v1408 = vshrl.u32 %v1407, 7
        %v1409 = vsub.s32 %v1406, %v1408
        %v1410 = vrot.slane %v1402, %v1409
        %v1412 = vunpack.c.l.s4 1934713408
        %v1413 = vunpack.c.0.s8 %v1412
        %v1414 = vlaneseq
        %v1415 = vshrl.u32 %v1414, 7
        %v1416 = vsub.s32 %v1413, %v1415
        %v1417 = vrot.slane %v1403, %v1416
        %v1418 = vcombine.low %v1362, %v1378
        %v1419 = vcombine.high %v1362, %v1378
        %v1421 = vunpack.c.l.s4 1934713408
        %v1422 = vunpack.c.0.s8 %v1421
        %v1423 = vlaneseq
        %v1424 = vshrl.u32 %v1423, 7
        %v1425 = vsub.s32 %v1422, %v1424
        %v1426 = vrot.slane %v1418, %v1425
        %v1428 = vunpack.c.l.s4 1934713408
        %v1429 = vunpack.c.0.s8 %v1428
        %v1430 = vlaneseq
        %v1431 = vshrl.u32 %v1430, 7
        %v1432 = vsub.s32 %v1429, %v1431
        %v1433 = vrot.slane %v1419, %v1432
        %v1434 = vcombine.low %v1369, %v1385
        %v1435 = vcombine.high %v1369, %v1385
        %v1437 = vunpack.c.l.s4 1934713408
        %v1438 = vunpack.c.0.s8 %v1437
        %v1439 = vlaneseq
        %v1440 = vshrl.u32 %v1439, 7
        %v1441 = vsub.s32 %v1438, %v1440
        %v1442 = vrot.slane %v1434, %v1441
        %v1444 = vunpack.c.l.s4 1934713408
        %v1445 = vunpack.c.0.s8 %v1444
        %v1446 = vlaneseq
        %v1447 = vshrl.u32 %v1446, 7
        %v1448 = vsub.s32 %v1445, %v1447
        %v1449 = vrot.slane %v1435, %v1448
        %v1450 = vcombine.low %v1394, %v1426
        %v1451 = vcombine.high %v1394, %v1426
        %v1452 = vcombine.low %v1401, %v1433
        %v1453 = vcombine.high %v1401, %v1433
        %v1454 = vcombine.low %v1410, %v1442
        %v1455 = vcombine.high %v1410, %v1442
        %v1456 = vcombine.low %v1417, %v1449
        %v1457 = vcombine.high %v1417, %v1449
        %1490 = vset.pattern.permute.xlu0 0
        %1491 = vperm.xlu0 %1490, %v498
        %v1492 = vpop.permute.xlu0 %1491
        %1493 = vset.pattern.permute.xlu0 0
        %1494 = vperm.xlu0 %1493, %v500
        %v1495 = vpop.permute.xlu0 %1494
        %1496 = vset.pattern.permute.xlu0 0
        %1497 = vperm.xlu0 %1496, %v502
        %v1498 = vpop.permute.xlu0 %1497
        %1499 = vset.pattern.permute.xlu0 0
        %1500 = vperm.xlu0 %1499, %v504
        %v1501 = vpop.permute.xlu0 %1500
        %1502 = vset.pattern.permute.xlu0 0
        %1503 = vperm.xlu0 %1502, %v634
        %v1504 = vpop.permute.xlu0 %1503
        %1505 = vset.pattern.permute.xlu0 0
        %1506 = vperm.xlu0 %1505, %v636
        %v1507 = vpop.permute.xlu0 %1506
        %1508 = vset.pattern.permute.xlu0 0
        %1509 = vperm.xlu0 %1508, %v638
        %v1510 = vpop.permute.xlu0 %1509
        %1511 = vset.pattern.permute.xlu0 0
        %1512 = vperm.xlu0 %1511, %v640
        %v1513 = vpop.permute.xlu0 %1512
        %1514 = vset.pattern.permute.xlu0 0
        %1515 = vperm.xlu0 %1514, %v770
        %v1516 = vpop.permute.xlu0 %1515
        %1517 = vset.pattern.permute.xlu0 0
        %1518 = vperm.xlu0 %1517, %v772
        %v1519 = vpop.permute.xlu0 %1518
        %1520 = vset.pattern.permute.xlu0 0
        %1521 = vperm.xlu0 %1520, %v774
        %v1522 = vpop.permute.xlu0 %1521
        %1523 = vset.pattern.permute.xlu0 0
        %1524 = vperm.xlu0 %1523, %v776
        %v1525 = vpop.permute.xlu0 %1524
        %1526 = vset.pattern.permute.xlu0 0
        %1527 = vperm.xlu0 %1526, %v906
        %v1528 = vpop.permute.xlu0 %1527
        %1529 = vset.pattern.permute.xlu0 0
        %1530 = vperm.xlu0 %1529, %v908
        %v1531 = vpop.permute.xlu0 %1530
        %1532 = vset.pattern.permute.xlu0 0
        %1533 = vperm.xlu0 %1532, %v910
        %v1534 = vpop.permute.xlu0 %1533
        %1535 = vset.pattern.permute.xlu0 0
        %1536 = vperm.xlu0 %1535, %v912
        %v1537 = vpop.permute.xlu0 %1536
        %1538 = vset.pattern.permute.xlu0 0
        %1539 = vperm.xlu0 %1538, %v1042
        %v1540 = vpop.permute.xlu0 %1539
        %1541 = vset.pattern.permute.xlu0 0
        %1542 = vperm.xlu0 %1541, %v1044
        %v1543 = vpop.permute.xlu0 %1542
        %1544 = vset.pattern.permute.xlu0 0
        %1545 = vperm.xlu0 %1544, %v1046
        %v1546 = vpop.permute.xlu0 %1545
        %1547 = vset.pattern.permute.xlu0 0
        %1548 = vperm.xlu0 %1547, %v1048
        %v1549 = vpop.permute.xlu0 %1548
        %1550 = vset.pattern.permute.xlu0 0
        %1551 = vperm.xlu0 %1550, %v1178
        %v1552 = vpop.permute.xlu0 %1551
        %1553 = vset.pattern.permute.xlu0 0
        %1554 = vperm.xlu0 %1553, %v1180
        %v1555 = vpop.permute.xlu0 %1554
        %1556 = vset.pattern.permute.xlu0 0
        %1557 = vperm.xlu0 %1556, %v1182
        %v1558 = vpop.permute.xlu0 %1557
        %1559 = vset.pattern.permute.xlu0 0
        %1560 = vperm.xlu0 %1559, %v1184
        %v1561 = vpop.permute.xlu0 %1560
        %1562 = vset.pattern.permute.xlu0 0
        %1563 = vperm.xlu0 %1562, %v1314
        %v1564 = vpop.permute.xlu0 %1563
        %1565 = vset.pattern.permute.xlu0 0
        %1566 = vperm.xlu0 %1565, %v1316
        %v1567 = vpop.permute.xlu0 %1566
        %1568 = vset.pattern.permute.xlu0 0
        %1569 = vperm.xlu0 %1568, %v1318
        %v1570 = vpop.permute.xlu0 %1569
        %1571 = vset.pattern.permute.xlu0 0
        %1572 = vperm.xlu0 %1571, %v1320
        %v1573 = vpop.permute.xlu0 %1572
        %1574 = vset.pattern.permute.xlu0 0
        %1575 = vperm.xlu0 %1574, %v1450
        %v1576 = vpop.permute.xlu0 %1575
        %1577 = vset.pattern.permute.xlu0 0
        %1578 = vperm.xlu0 %1577, %v1452
        %v1579 = vpop.permute.xlu0 %1578
        %1580 = vset.pattern.permute.xlu0 0
        %1581 = vperm.xlu0 %1580, %v1454
        %v1582 = vpop.permute.xlu0 %1581
        %1583 = vset.pattern.permute.xlu0 0
        %1584 = vperm.xlu0 %1583, %v1456
        %v1585 = vpop.permute.xlu0 %1584
        %v1586 = vlaneseq
        %v1587 = vand.u32 %v1586, 127
        %v1588 = vlaneseq
        %v1589 = vshrl.u32 %v1588, 7
        %v1590 = vsub.s32 %v1587, %v1589
        %v1591 = vrot.slane %v1492, %v1590
        %v1592 = vlaneseq
        %v1593 = vshrl.u32 %v1592, 7
        %v1594 = vsub.s32 %v1587, %v1593
        %v1595 = vrot.slane %v1495, %v1594
        %v1596 = vlaneseq
        %v1597 = vshrl.u32 %v1596, 7
        %v1598 = vsub.s32 %v1587, %v1597
        %v1599 = vrot.slane %v1498, %v1598
        %v1600 = vlaneseq
        %v1601 = vshrl.u32 %v1600, 7
        %v1602 = vsub.s32 %v1587, %v1601
        %v1603 = vrot.slane %v1501, %v1602
        %v1604 = vlaneseq
        %v1605 = vshrl.u32 %v1604, 7
        %v1606 = vsub.s32 %v1587, %v1605
        %v1607 = vrot.slane %v1504, %v1606
        %v1608 = vlaneseq
        %v1609 = vshrl.u32 %v1608, 7
        %v1610 = vsub.s32 %v1587, %v1609
        %v1611 = vrot.slane %v1507, %v1610
        %v1612 = vlaneseq
        %v1613 = vshrl.u32 %v1612, 7
        %v1614 = vsub.s32 %v1587, %v1613
        %v1615 = vrot.slane %v1510, %v1614
        %v1616 = vlaneseq
        %v1617 = vshrl.u32 %v1616, 7
        %v1618 = vsub.s32 %v1587, %v1617
        %v1619 = vrot.slane %v1513, %v1618
        %v1620 = vlaneseq
        %v1621 = vshrl.u32 %v1620, 7
        %v1622 = vsub.s32 %v1587, %v1621
        %v1623 = vrot.slane %v1516, %v1622
        %v1624 = vlaneseq
        %v1625 = vshrl.u32 %v1624, 7
        %v1626 = vsub.s32 %v1587, %v1625
        %v1627 = vrot.slane %v1519, %v1626
        %v1628 = vlaneseq
        %v1629 = vshrl.u32 %v1628, 7
        %v1630 = vsub.s32 %v1587, %v1629
        %v1631 = vrot.slane %v1522, %v1630
        %v1632 = vlaneseq
        %v1633 = vshrl.u32 %v1632, 7
        %v1634 = vsub.s32 %v1587, %v1633
        %v1635 = vrot.slane %v1525, %v1634
        %v1636 = vlaneseq
        %v1637 = vshrl.u32 %v1636, 7
        %v1638 = vsub.s32 %v1587, %v1637
        %v1639 = vrot.slane %v1528, %v1638
        %v1640 = vlaneseq
        %v1641 = vshrl.u32 %v1640, 7
        %v1642 = vsub.s32 %v1587, %v1641
        %v1643 = vrot.slane %v1531, %v1642
        %v1644 = vlaneseq
        %v1645 = vshrl.u32 %v1644, 7
        %v1646 = vsub.s32 %v1587, %v1645
        %v1647 = vrot.slane %v1534, %v1646
        %v1648 = vlaneseq
        %v1649 = vshrl.u32 %v1648, 7
        %v1650 = vsub.s32 %v1587, %v1649
        %v1651 = vrot.slane %v1537, %v1650
        %v1652 = vlaneseq
        %v1653 = vshrl.u32 %v1652, 7
        %v1654 = vsub.s32 %v1587, %v1653
        %v1655 = vrot.slane %v1540, %v1654
        %v1656 = vlaneseq
        %v1657 = vshrl.u32 %v1656, 7
        %v1658 = vsub.s32 %v1587, %v1657
        %v1659 = vrot.slane %v1543, %v1658
        %v1660 = vlaneseq
        %v1661 = vshrl.u32 %v1660, 7
        %v1662 = vsub.s32 %v1587, %v1661
        %v1663 = vrot.slane %v1546, %v1662
        %v1664 = vlaneseq
        %v1665 = vshrl.u32 %v1664, 7
        %v1666 = vsub.s32 %v1587, %v1665
        %v1667 = vrot.slane %v1549, %v1666
        %v1668 = vlaneseq
        %v1669 = vshrl.u32 %v1668, 7
        %v1670 = vsub.s32 %v1587, %v1669
        %v1671 = vrot.slane %v1552, %v1670
        %v1672 = vlaneseq
        %v1673 = vshrl.u32 %v1672, 7
        %v1674 = vsub.s32 %v1587, %v1673
        %v1675 = vrot.slane %v1555, %v1674
        %v1676 = vlaneseq
        %v1677 = vshrl.u32 %v1676, 7
        %v1678 = vsub.s32 %v1587, %v1677
        %v1679 = vrot.slane %v1558, %v1678
        %v1680 = vlaneseq
        %v1681 = vshrl.u32 %v1680, 7
        %v1682 = vsub.s32 %v1587, %v1681
        %v1683 = vrot.slane %v1561, %v1682
        %v1684 = vlaneseq
        %v1685 = vshrl.u32 %v1684, 7
        %v1686 = vsub.s32 %v1587, %v1685
        %v1687 = vrot.slane %v1564, %v1686
        %v1688 = vlaneseq
        %v1689 = vshrl.u32 %v1688, 7
        %v1690 = vsub.s32 %v1587, %v1689
        %v1691 = vrot.slane %v1567, %v1690
        %v1692 = vlaneseq
        %v1693 = vshrl.u32 %v1692, 7
        %v1694 = vsub.s32 %v1587, %v1693
        %v1695 = vrot.slane %v1570, %v1694
        %v1696 = vlaneseq
        %v1697 = vshrl.u32 %v1696, 7
        %v1698 = vsub.s32 %v1587, %v1697
        %v1699 = vrot.slane %v1573, %v1698
        %v1700 = vlaneseq
        %v1701 = vshrl.u32 %v1700, 7
        %v1702 = vsub.s32 %v1587, %v1701
        %v1703 = vrot.slane %v1576, %v1702
        %v1704 = vlaneseq
        %v1705 = vshrl.u32 %v1704, 7
        %v1706 = vsub.s32 %v1587, %v1705
        %v1707 = vrot.slane %v1579, %v1706
        %v1708 = vlaneseq
        %v1709 = vshrl.u32 %v1708, 7
        %v1710 = vsub.s32 %v1587, %v1709
        %v1711 = vrot.slane %v1582, %v1710
        %v1712 = vlaneseq
        %v1713 = vshrl.u32 %v1712, 7
        %v1714 = vsub.s32 %v1587, %v1713
        %v1715 = vrot.slane %v1585, %v1714
        %vm1716 = vcmask 1041409
        %v1717 = vsel %vm1716, %v1595, %v1591
        %vm1718 = vcmask 1042434
        %v1719 = vsel %vm1718, %v1599, %v1717
        %vm1720 = vcmask 1043459
        %v1721 = vsel %vm1720, %v1603, %v1719
        %vm1722 = vcmask 1044484
        %v1723 = vsel %vm1722, %v1607, %v1721
        %vm1724 = vcmask 1045509
        %v1725 = vsel %vm1724, %v1611, %v1723
        %vm1726 = vcmask 1046534
        %v1727 = vsel %vm1726, %v1615, %v1725
        %vm1728 = vcmask 1047559
        %v1729 = vsel %vm1728, %v1619, %v1727
        %v1730 = vsel %vm1716, %v1627, %v1623
        %v1731 = vsel %vm1718, %v1631, %v1730
        %v1732 = vsel %vm1720, %v1635, %v1731
        %v1733 = vsel %vm1722, %v1639, %v1732
        %v1734 = vsel %vm1724, %v1643, %v1733
        %v1735 = vsel %vm1726, %v1647, %v1734
        %v1736 = vsel %vm1728, %v1651, %v1735
        %v1737 = vsel %vm1716, %v1659, %v1655
        %v1738 = vsel %vm1718, %v1663, %v1737
        %v1739 = vsel %vm1720, %v1667, %v1738
        %v1740 = vsel %vm1722, %v1671, %v1739
        %v1741 = vsel %vm1724, %v1675, %v1740
        %v1742 = vsel %vm1726, %v1679, %v1741
        %v1743 = vsel %vm1728, %v1683, %v1742
        %v1744 = vsel %vm1716, %v1691, %v1687
        %v1745 = vsel %vm1718, %v1695, %v1744
        %v1746 = vsel %vm1720, %v1699, %v1745
        %v1747 = vsel %vm1722, %v1703, %v1746
        %v1748 = vsel %vm1724, %v1707, %v1747
        %v1749 = vsel %vm1726, %v1711, %v1748
        %v1750 = vsel %vm1728, %v1715, %v1749
        %vm1755 = vcmask 64512
        %1756 = vst.msk [vmem:[%s184] sm:$0xff] %vm1755, %v1729
        %1757 = vst.msk [vmem:[%s184 + $0x8] sm:$0xff] %vm1755, %v1736
        %1758 = vst.msk [vmem:[%s184 + $0x10] sm:$0xff] %vm1755, %v1743
        %1759 = vst.msk [vmem:[%s184 + $0x18] sm:$0xff] %vm1755, %v1750
        %1792 = vset.pattern.permute.xlu0 0
        %1793 = vperm.xlu0 %1792, %v499
        %v1794 = vpop.permute.xlu0 %1793
        %1795 = vset.pattern.permute.xlu0 0
        %1796 = vperm.xlu0 %1795, %v501
        %v1797 = vpop.permute.xlu0 %1796
        %1798 = vset.pattern.permute.xlu0 0
        %1799 = vperm.xlu0 %1798, %v503
        %v1800 = vpop.permute.xlu0 %1799
        %1801 = vset.pattern.permute.xlu0 0
        %1802 = vperm.xlu0 %1801, %v505
        %v1803 = vpop.permute.xlu0 %1802
        %1804 = vset.pattern.permute.xlu0 0
        %1805 = vperm.xlu0 %1804, %v635
        %v1806 = vpop.permute.xlu0 %1805
        %1807 = vset.pattern.permute.xlu0 0
        %1808 = vperm.xlu0 %1807, %v637
        %v1809 = vpop.permute.xlu0 %1808
        %1810 = vset.pattern.permute.xlu0 0
        %1811 = vperm.xlu0 %1810, %v639
        %v1812 = vpop.permute.xlu0 %1811
        %1813 = vset.pattern.permute.xlu0 0
        %1814 = vperm.xlu0 %1813, %v641
        %v1815 = vpop.permute.xlu0 %1814
        %1816 = vset.pattern.permute.xlu0 0
        %1817 = vperm.xlu0 %1816, %v771
        %v1818 = vpop.permute.xlu0 %1817
        %1819 = vset.pattern.permute.xlu0 0
        %1820 = vperm.xlu0 %1819, %v773
        %v1821 = vpop.permute.xlu0 %1820
        %1822 = vset.pattern.permute.xlu0 0
        %1823 = vperm.xlu0 %1822, %v775
        %v1824 = vpop.permute.xlu0 %1823
        %1825 = vset.pattern.permute.xlu0 0
        %1826 = vperm.xlu0 %1825, %v777
        %v1827 = vpop.permute.xlu0 %1826
        %1828 = vset.pattern.permute.xlu0 0
        %1829 = vperm.xlu0 %1828, %v907
        %v1830 = vpop.permute.xlu0 %1829
        %1831 = vset.pattern.permute.xlu0 0
        %1832 = vperm.xlu0 %1831, %v909
        %v1833 = vpop.permute.xlu0 %1832
        %1834 = vset.pattern.permute.xlu0 0
        %1835 = vperm.xlu0 %1834, %v911
        %v1836 = vpop.permute.xlu0 %1835
        %1837 = vset.pattern.permute.xlu0 0
        %1838 = vperm.xlu0 %1837, %v913
        %v1839 = vpop.permute.xlu0 %1838
        %1840 = vset.pattern.permute.xlu0 0
        %1841 = vperm.xlu0 %1840, %v1043
        %v1842 = vpop.permute.xlu0 %1841
        %1843 = vset.pattern.permute.xlu0 0
        %1844 = vperm.xlu0 %1843, %v1045
        %v1845 = vpop.permute.xlu0 %1844
        %1846 = vset.pattern.permute.xlu0 0
        %1847 = vperm.xlu0 %1846, %v1047
        %v1848 = vpop.permute.xlu0 %1847
        %1849 = vset.pattern.permute.xlu0 0
        %1850 = vperm.xlu0 %1849, %v1049
        %v1851 = vpop.permute.xlu0 %1850
        %1852 = vset.pattern.permute.xlu0 0
        %1853 = vperm.xlu0 %1852, %v1179
        %v1854 = vpop.permute.xlu0 %1853
        %1855 = vset.pattern.permute.xlu0 0
        %1856 = vperm.xlu0 %1855, %v1181
        %v1857 = vpop.permute.xlu0 %1856
        %1858 = vset.pattern.permute.xlu0 0
        %1859 = vperm.xlu0 %1858, %v1183
        %v1860 = vpop.permute.xlu0 %1859
        %1861 = vset.pattern.permute.xlu0 0
        %1862 = vperm.xlu0 %1861, %v1185
        %v1863 = vpop.permute.xlu0 %1862
        %1864 = vset.pattern.permute.xlu0 0
        %1865 = vperm.xlu0 %1864, %v1315
        %v1866 = vpop.permute.xlu0 %1865
        %1867 = vset.pattern.permute.xlu0 0
        %1868 = vperm.xlu0 %1867, %v1317
        %v1869 = vpop.permute.xlu0 %1868
        %1870 = vset.pattern.permute.xlu0 0
        %1871 = vperm.xlu0 %1870, %v1319
        %v1872 = vpop.permute.xlu0 %1871
        %1873 = vset.pattern.permute.xlu0 0
        %1874 = vperm.xlu0 %1873, %v1321
        %v1875 = vpop.permute.xlu0 %1874
        %1876 = vset.pattern.permute.xlu0 0
        %1877 = vperm.xlu0 %1876, %v1451
        %v1878 = vpop.permute.xlu0 %1877
        %1879 = vset.pattern.permute.xlu0 0
        %1880 = vperm.xlu0 %1879, %v1453
        %v1881 = vpop.permute.xlu0 %1880
        %1882 = vset.pattern.permute.xlu0 0
        %1883 = vperm.xlu0 %1882, %v1455
        %v1884 = vpop.permute.xlu0 %1883
        %1885 = vset.pattern.permute.xlu0 0
        %1886 = vperm.xlu0 %1885, %v1457
        %v1887 = vpop.permute.xlu0 %1886
        %v1888 = vlaneseq
        %v1889 = vshrl.u32 %v1888, 7
        %v1890 = vsub.s32 %v1587, %v1889
        %v1891 = vrot.slane %v1794, %v1890
        %v1892 = vlaneseq
        %v1893 = vshrl.u32 %v1892, 7
        %v1894 = vsub.s32 %v1587, %v1893
        %v1895 = vrot.slane %v1797, %v1894
        %v1896 = vlaneseq
        %v1897 = vshrl.u32 %v1896, 7
        %v1898 = vsub.s32 %v1587, %v1897
        %v1899 = vrot.slane %v1800, %v1898
        %v1900 = vlaneseq
        %v1901 = vshrl.u32 %v1900, 7
        %v1902 = vsub.s32 %v1587, %v1901
        %v1903 = vrot.slane %v1803, %v1902
        %v1904 = vlaneseq
        %v1905 = vshrl.u32 %v1904, 7
        %v1906 = vsub.s32 %v1587, %v1905
        %v1907 = vrot.slane %v1806, %v1906
        %v1908 = vlaneseq
        %v1909 = vshrl.u32 %v1908, 7
        %v1910 = vsub.s32 %v1587, %v1909
        %v1911 = vrot.slane %v1809, %v1910
        %v1912 = vlaneseq
        %v1913 = vshrl.u32 %v1912, 7
        %v1914 = vsub.s32 %v1587, %v1913
        %v1915 = vrot.slane %v1812, %v1914
        %v1916 = vlaneseq
        %v1917 = vshrl.u32 %v1916, 7
        %v1918 = vsub.s32 %v1587, %v1917
        %v1919 = vrot.slane %v1815, %v1918
        %v1920 = vlaneseq
        %v1921 = vshrl.u32 %v1920, 7
        %v1922 = vsub.s32 %v1587, %v1921
        %v1923 = vrot.slane %v1818, %v1922
        %v1924 = vlaneseq
        %v1925 = vshrl.u32 %v1924, 7
        %v1926 = vsub.s32 %v1587, %v1925
        %v1927 = vrot.slane %v1821, %v1926
        %v1928 = vlaneseq
        %v1929 = vshrl.u32 %v1928, 7
        %v1930 = vsub.s32 %v1587, %v1929
        %v1931 = vrot.slane %v1824, %v1930
        %v1932 = vlaneseq
        %v1933 = vshrl.u32 %v1932, 7
        %v1934 = vsub.s32 %v1587, %v1933
        %v1935 = vrot.slane %v1827, %v1934
        %v1936 = vlaneseq
        %v1937 = vshrl.u32 %v1936, 7
        %v1938 = vsub.s32 %v1587, %v1937
        %v1939 = vrot.slane %v1830, %v1938
        %v1940 = vlaneseq
        %v1941 = vshrl.u32 %v1940, 7
        %v1942 = vsub.s32 %v1587, %v1941
        %v1943 = vrot.slane %v1833, %v1942
        %v1944 = vlaneseq
        %v1945 = vshrl.u32 %v1944, 7
        %v1946 = vsub.s32 %v1587, %v1945
        %v1947 = vrot.slane %v1836, %v1946
        %v1948 = vlaneseq
        %v1949 = vshrl.u32 %v1948, 7
        %v1950 = vsub.s32 %v1587, %v1949
        %v1951 = vrot.slane %v1839, %v1950
        %v1952 = vlaneseq
        %v1953 = vshrl.u32 %v1952, 7
        %v1954 = vsub.s32 %v1587, %v1953
        %v1955 = vrot.slane %v1842, %v1954
        %v1956 = vlaneseq
        %v1957 = vshrl.u32 %v1956, 7
        %v1958 = vsub.s32 %v1587, %v1957
        %v1959 = vrot.slane %v1845, %v1958
        %v1960 = vlaneseq
        %v1961 = vshrl.u32 %v1960, 7
        %v1962 = vsub.s32 %v1587, %v1961
        %v1963 = vrot.slane %v1848, %v1962
        %v1964 = vlaneseq
        %v1965 = vshrl.u32 %v1964, 7
        %v1966 = vsub.s32 %v1587, %v1965
        %v1967 = vrot.slane %v1851, %v1966
        %v1968 = vlaneseq
        %v1969 = vshrl.u32 %v1968, 7
        %v1970 = vsub.s32 %v1587, %v1969
        %v1971 = vrot.slane %v1854, %v1970
        %v1972 = vlaneseq
        %v1973 = vshrl.u32 %v1972, 7
        %v1974 = vsub.s32 %v1587, %v1973
        %v1975 = vrot.slane %v1857, %v1974
        %v1976 = vlaneseq
        %v1977 = vshrl.u32 %v1976, 7
        %v1978 = vsub.s32 %v1587, %v1977
        %v1979 = vrot.slane %v1860, %v1978
        %v1980 = vlaneseq
        %v1981 = vshrl.u32 %v1980, 7
        %v1982 = vsub.s32 %v1587, %v1981
        %v1983 = vrot.slane %v1863, %v1982
        %v1984 = vlaneseq
        %v1985 = vshrl.u32 %v1984, 7
        %v1986 = vsub.s32 %v1587, %v1985
        %v1987 = vrot.slane %v1866, %v1986
        %v1988 = vlaneseq
        %v1989 = vshrl.u32 %v1988, 7
        %v1990 = vsub.s32 %v1587, %v1989
        %v1991 = vrot.slane %v1869, %v1990
        %v1992 = vlaneseq
        %v1993 = vshrl.u32 %v1992, 7
        %v1994 = vsub.s32 %v1587, %v1993
        %v1995 = vrot.slane %v1872, %v1994
        %v1996 = vlaneseq
        %v1997 = vshrl.u32 %v1996, 7
        %v1998 = vsub.s32 %v1587, %v1997
        %v1999 = vrot.slane %v1875, %v1998
        %v2000 = vlaneseq
        %v2001 = vshrl.u32 %v2000, 7
        %v2002 = vsub.s32 %v1587, %v2001
        %v2003 = vrot.slane %v1878, %v2002
        %v2004 = vlaneseq
        %v2005 = vshrl.u32 %v2004, 7
        %v2006 = vsub.s32 %v1587, %v2005
        %v2007 = vrot.slane %v1881, %v2006
        %v2008 = vlaneseq
        %v2009 = vshrl.u32 %v2008, 7
        %v2010 = vsub.s32 %v1587, %v2009
        %v2011 = vrot.slane %v1884, %v2010
        %v2012 = vlaneseq
        %v2013 = vshrl.u32 %v2012, 7
        %v2014 = vsub.s32 %v1587, %v2013
        %v2015 = vrot.slane %v1887, %v2014
        %v2016 = vsel %vm1716, %v1895, %v1891
        %v2017 = vsel %vm1718, %v1899, %v2016
        %v2018 = vsel %vm1720, %v1903, %v2017
        %v2019 = vsel %vm1722, %v1907, %v2018
        %v2020 = vsel %vm1724, %v1911, %v2019
        %v2021 = vsel %vm1726, %v1915, %v2020
        %v2022 = vsel %vm1728, %v1919, %v2021
        %v2023 = vsel %vm1716, %v1927, %v1923
        %v2024 = vsel %vm1718, %v1931, %v2023
        %v2025 = vsel %vm1720, %v1935, %v2024
        %v2026 = vsel %vm1722, %v1939, %v2025
        %v2027 = vsel %vm1724, %v1943, %v2026
        %v2028 = vsel %vm1726, %v1947, %v2027
        %v2029 = vsel %vm1728, %v1951, %v2028
        %v2030 = vsel %vm1716, %v1959, %v1955
        %v2031 = vsel %vm1718, %v1963, %v2030
        %v2032 = vsel %vm1720, %v1967, %v2031
        %v2033 = vsel %vm1722, %v1971, %v2032
        %v2034 = vsel %vm1724, %v1975, %v2033
        %v2035 = vsel %vm1726, %v1979, %v2034
        %v2036 = vsel %vm1728, %v1983, %v2035
        %v2037 = vsel %vm1716, %v1991, %v1987
        %v2038 = vsel %vm1718, %v1995, %v2037
        %v2039 = vsel %vm1720, %v1999, %v2038
        %v2040 = vsel %vm1722, %v2003, %v2039
        %v2041 = vsel %vm1724, %v2007, %v2040
        %v2042 = vsel %vm1726, %v2011, %v2041
        %v2043 = vsel %vm1728, %v2015, %v2042
        %s2048 = scalar_lea.vmem %s184, 32
        %2049 = vst.msk [vmem:[%s2048] sm:$0xff] %vm1755, %v2022
        %2050 = vst.msk [vmem:[%s2048 + $0x8] sm:$0xff] %vm1755, %v2029
        %2051 = vst.msk [vmem:[%s2048 + $0x10] sm:$0xff] %vm1755, %v2036
        %2052 = vst.msk [vmem:[%s2048 + $0x18] sm:$0xff] %vm1755, %v2043
        %2053 = vset.pattern.permute.xlu0 1
        %2054 = vperm.xlu0 %2053, %v498
        %v2055 = vpop.permute.xlu0 %2054
        %2056 = vset.pattern.permute.xlu0 1
        %2057 = vperm.xlu0 %2056, %v500
        %v2058 = vpop.permute.xlu0 %2057
        %2059 = vset.pattern.permute.xlu0 1
        %2060 = vperm.xlu0 %2059, %v502
        %v2061 = vpop.permute.xlu0 %2060
        %2062 = vset.pattern.permute.xlu0 1
        %2063 = vperm.xlu0 %2062, %v504
        %v2064 = vpop.permute.xlu0 %2063
        %2065 = vset.pattern.permute.xlu0 1
        %2066 = vperm.xlu0 %2065, %v634
        %v2067 = vpop.permute.xlu0 %2066
        %2068 = vset.pattern.permute.xlu0 1
        %2069 = vperm.xlu0 %2068, %v636
        %v2070 = vpop.permute.xlu0 %2069
        %2071 = vset.pattern.permute.xlu0 1
        %2072 = vperm.xlu0 %2071, %v638
        %v2073 = vpop.permute.xlu0 %2072
        %2074 = vset.pattern.permute.xlu0 1
        %2075 = vperm.xlu0 %2074, %v640
        %v2076 = vpop.permute.xlu0 %2075
        %2077 = vset.pattern.permute.xlu0 1
        %2078 = vperm.xlu0 %2077, %v770
        %v2079 = vpop.permute.xlu0 %2078
        %2080 = vset.pattern.permute.xlu0 1
        %2081 = vperm.xlu0 %2080, %v772
        %v2082 = vpop.permute.xlu0 %2081
        %2083 = vset.pattern.permute.xlu0 1
        %2084 = vperm.xlu0 %2083, %v774
        %v2085 = vpop.permute.xlu0 %2084
        %2086 = vset.pattern.permute.xlu0 1
        %2087 = vperm.xlu0 %2086, %v776
        %v2088 = vpop.permute.xlu0 %2087
        %2089 = vset.pattern.permute.xlu0 1
        %2090 = vperm.xlu0 %2089, %v906
        %v2091 = vpop.permute.xlu0 %2090
        %2092 = vset.pattern.permute.xlu0 1
        %2093 = vperm.xlu0 %2092, %v908
        %v2094 = vpop.permute.xlu0 %2093
        %2095 = vset.pattern.permute.xlu0 1
        %2096 = vperm.xlu0 %2095, %v910
        %v2097 = vpop.permute.xlu0 %2096
        %2098 = vset.pattern.permute.xlu0 1
        %2099 = vperm.xlu0 %2098, %v912
        %v2100 = vpop.permute.xlu0 %2099
        %2101 = vset.pattern.permute.xlu0 1
        %2102 = vperm.xlu0 %2101, %v1042
        %v2103 = vpop.permute.xlu0 %2102
        %2104 = vset.pattern.permute.xlu0 1
        %2105 = vperm.xlu0 %2104, %v1044
        %v2106 = vpop.permute.xlu0 %2105
        %2107 = vset.pattern.permute.xlu0 1
        %2108 = vperm.xlu0 %2107, %v1046
        %v2109 = vpop.permute.xlu0 %2108
        %2110 = vset.pattern.permute.xlu0 1
        %2111 = vperm.xlu0 %2110, %v1048
        %v2112 = vpop.permute.xlu0 %2111
        %2113 = vset.pattern.permute.xlu0 1
        %2114 = vperm.xlu0 %2113, %v1178
        %v2115 = vpop.permute.xlu0 %2114
        %2116 = vset.pattern.permute.xlu0 1
        %2117 = vperm.xlu0 %2116, %v1180
        %v2118 = vpop.permute.xlu0 %2117
        %2119 = vset.pattern.permute.xlu0 1
        %2120 = vperm.xlu0 %2119, %v1182
        %v2121 = vpop.permute.xlu0 %2120
        %2122 = vset.pattern.permute.xlu0 1
        %2123 = vperm.xlu0 %2122, %v1184
        %v2124 = vpop.permute.xlu0 %2123
        %2125 = vset.pattern.permute.xlu0 1
        %2126 = vperm.xlu0 %2125, %v1314
        %v2127 = vpop.permute.xlu0 %2126
        %2128 = vset.pattern.permute.xlu0 1
        %2129 = vperm.xlu0 %2128, %v1316
        %v2130 = vpop.permute.xlu0 %2129
        %2131 = vset.pattern.permute.xlu0 1
        %2132 = vperm.xlu0 %2131, %v1318
        %v2133 = vpop.permute.xlu0 %2132
        %2134 = vset.pattern.permute.xlu0 1
        %2135 = vperm.xlu0 %2134, %v1320
        %v2136 = vpop.permute.xlu0 %2135
        %2137 = vset.pattern.permute.xlu0 1
        %2138 = vperm.xlu0 %2137, %v1450
        %v2139 = vpop.permute.xlu0 %2138
        %2140 = vset.pattern.permute.xlu0 1
        %2141 = vperm.xlu0 %2140, %v1452
        %v2142 = vpop.permute.xlu0 %2141
        %2143 = vset.pattern.permute.xlu0 1
        %2144 = vperm.xlu0 %2143, %v1454
        %v2145 = vpop.permute.xlu0 %2144
        %2146 = vset.pattern.permute.xlu0 1
        %2147 = vperm.xlu0 %2146, %v1456
        %v2148 = vpop.permute.xlu0 %2147
        %v2149 = vlaneseq
        %v2150 = vshrl.u32 %v2149, 7
        %v2151 = vsub.s32 %v1587, %v2150
        %v2152 = vrot.slane %v2055, %v2151
        %v2153 = vlaneseq
        %v2154 = vshrl.u32 %v2153, 7
        %v2155 = vsub.s32 %v1587, %v2154
        %v2156 = vrot.slane %v2058, %v2155
        %v2157 = vlaneseq
        %v2158 = vshrl.u32 %v2157, 7
        %v2159 = vsub.s32 %v1587, %v2158
        %v2160 = vrot.slane %v2061, %v2159
        %v2161 = vlaneseq
        %v2162 = vshrl.u32 %v2161, 7
        %v2163 = vsub.s32 %v1587, %v2162
        %v2164 = vrot.slane %v2064, %v2163
        %v2165 = vlaneseq
        %v2166 = vshrl.u32 %v2165, 7
        %v2167 = vsub.s32 %v1587, %v2166
        %v2168 = vrot.slane %v2067, %v2167
        %v2169 = vlaneseq
        %v2170 = vshrl.u32 %v2169, 7
        %v2171 = vsub.s32 %v1587, %v2170
        %v2172 = vrot.slane %v2070, %v2171
        %v2173 = vlaneseq
        %v2174 = vshrl.u32 %v2173, 7
        %v2175 = vsub.s32 %v1587, %v2174
        %v2176 = vrot.slane %v2073, %v2175
        %v2177 = vlaneseq
        %v2178 = vshrl.u32 %v2177, 7
        %v2179 = vsub.s32 %v1587, %v2178
        %v2180 = vrot.slane %v2076, %v2179
        %v2181 = vlaneseq
        %v2182 = vshrl.u32 %v2181, 7
        %v2183 = vsub.s32 %v1587, %v2182
        %v2184 = vrot.slane %v2079, %v2183
        %v2185 = vlaneseq
        %v2186 = vshrl.u32 %v2185, 7
        %v2187 = vsub.s32 %v1587, %v2186
        %v2188 = vrot.slane %v2082, %v2187
        %v2189 = vlaneseq
        %v2190 = vshrl.u32 %v2189, 7
        %v2191 = vsub.s32 %v1587, %v2190
        %v2192 = vrot.slane %v2085, %v2191
        %v2193 = vlaneseq
        %v2194 = vshrl.u32 %v2193, 7
        %v2195 = vsub.s32 %v1587, %v2194
        %v2196 = vrot.slane %v2088, %v2195
        %v2197 = vlaneseq
        %v2198 = vshrl.u32 %v2197, 7
        %v2199 = vsub.s32 %v1587, %v2198
        %v2200 = vrot.slane %v2091, %v2199
        %v2201 = vlaneseq
        %v2202 = vshrl.u32 %v2201, 7
        %v2203 = vsub.s32 %v1587, %v2202
        %v2204 = vrot.slane %v2094, %v2203
        %v2205 = vlaneseq
        %v2206 = vshrl.u32 %v2205, 7
        %v2207 = vsub.s32 %v1587, %v2206
        %v2208 = vrot.slane %v2097, %v2207
        %v2209 = vlaneseq
        %v2210 = vshrl.u32 %v2209, 7
        %v2211 = vsub.s32 %v1587, %v2210
        %v2212 = vrot.slane %v2100, %v2211
        %v2213 = vlaneseq
        %v2214 = vshrl.u32 %v2213, 7
        %v2215 = vsub.s32 %v1587, %v2214
        %v2216 = vrot.slane %v2103, %v2215
        %v2217 = vlaneseq
        %v2218 = vshrl.u32 %v2217, 7
        %v2219 = vsub.s32 %v1587, %v2218
        %v2220 = vrot.slane %v2106, %v2219
        %v2221 = vlaneseq
        %v2222 = vshrl.u32 %v2221, 7
        %v2223 = vsub.s32 %v1587, %v2222
        %v2224 = vrot.slane %v2109, %v2223
        %v2225 = vlaneseq
        %v2226 = vshrl.u32 %v2225, 7
        %v2227 = vsub.s32 %v1587, %v2226
        %v2228 = vrot.slane %v2112, %v2227
        %v2229 = vlaneseq
        %v2230 = vshrl.u32 %v2229, 7
        %v2231 = vsub.s32 %v1587, %v2230
        %v2232 = vrot.slane %v2115, %v2231
        %v2233 = vlaneseq
        %v2234 = vshrl.u32 %v2233, 7
        %v2235 = vsub.s32 %v1587, %v2234
        %v2236 = vrot.slane %v2118, %v2235
        %v2237 = vlaneseq
        %v2238 = vshrl.u32 %v2237, 7
        %v2239 = vsub.s32 %v1587, %v2238
        %v2240 = vrot.slane %v2121, %v2239
        %v2241 = vlaneseq
        %v2242 = vshrl.u32 %v2241, 7
        %v2243 = vsub.s32 %v1587, %v2242
        %v2244 = vrot.slane %v2124, %v2243
        %v2245 = vlaneseq
        %v2246 = vshrl.u32 %v2245, 7
        %v2247 = vsub.s32 %v1587, %v2246
        %v2248 = vrot.slane %v2127, %v2247
        %v2249 = vlaneseq
        %v2250 = vshrl.u32 %v2249, 7
        %v2251 = vsub.s32 %v1587, %v2250
        %v2252 = vrot.slane %v2130, %v2251
        %v2253 = vlaneseq
        %v2254 = vshrl.u32 %v2253, 7
        %v2255 = vsub.s32 %v1587, %v2254
        %v2256 = vrot.slane %v2133, %v2255
        %v2257 = vlaneseq
        %v2258 = vshrl.u32 %v2257, 7
        %v2259 = vsub.s32 %v1587, %v2258
        %v2260 = vrot.slane %v2136, %v2259
        %v2261 = vlaneseq
        %v2262 = vshrl.u32 %v2261, 7
        %v2263 = vsub.s32 %v1587, %v2262
        %v2264 = vrot.slane %v2139, %v2263
        %v2265 = vlaneseq
        %v2266 = vshrl.u32 %v2265, 7
        %v2267 = vsub.s32 %v1587, %v2266
        %v2268 = vrot.slane %v2142, %v2267
        %v2269 = vlaneseq
        %v2270 = vshrl.u32 %v2269, 7
        %v2271 = vsub.s32 %v1587, %v2270
        %v2272 = vrot.slane %v2145, %v2271
        %v2273 = vlaneseq
        %v2274 = vshrl.u32 %v2273, 7
        %v2275 = vsub.s32 %v1587, %v2274
        %v2276 = vrot.slane %v2148, %v2275
        %v2277 = vsel %vm1716, %v2156, %v2152
        %v2278 = vsel %vm1718, %v2160, %v2277
        %v2279 = vsel %vm1720, %v2164, %v2278
        %v2280 = vsel %vm1722, %v2168, %v2279
        %v2281 = vsel %vm1724, %v2172, %v2280
        %v2282 = vsel %vm1726, %v2176, %v2281
        %v2283 = vsel %vm1728, %v2180, %v2282
        %v2284 = vsel %vm1716, %v2188, %v2184
        %v2285 = vsel %vm1718, %v2192, %v2284
        %v2286 = vsel %vm1720, %v2196, %v2285
        %v2287 = vsel %vm1722, %v2200, %v2286
        %v2288 = vsel %vm1724, %v2204, %v2287
        %v2289 = vsel %vm1726, %v2208, %v2288
        %v2290 = vsel %vm1728, %v2212, %v2289
        %v2291 = vsel %vm1716, %v2220, %v2216
        %v2292 = vsel %vm1718, %v2224, %v2291
        %v2293 = vsel %vm1720, %v2228, %v2292
        %v2294 = vsel %vm1722, %v2232, %v2293
        %v2295 = vsel %vm1724, %v2236, %v2294
        %v2296 = vsel %vm1726, %v2240, %v2295
        %v2297 = vsel %vm1728, %v2244, %v2296
        %v2298 = vsel %vm1716, %v2252, %v2248
        %v2299 = vsel %vm1718, %v2256, %v2298
        %v2300 = vsel %vm1720, %v2260, %v2299
        %v2301 = vsel %vm1722, %v2264, %v2300
        %v2302 = vsel %vm1724, %v2268, %v2301
        %v2303 = vsel %vm1726, %v2272, %v2302
        %v2304 = vsel %vm1728, %v2276, %v2303
        %s2309 = scalar_lea.vmem %s184, 64
        %2310 = vst.msk [vmem:[%s2309] sm:$0xff] %vm1755, %v2283
        %2311 = vst.msk [vmem:[%s2309 + $0x8] sm:$0xff] %vm1755, %v2290
        %2312 = vst.msk [vmem:[%s2309 + $0x10] sm:$0xff] %vm1755, %v2297
        %2313 = vst.msk [vmem:[%s2309 + $0x18] sm:$0xff] %vm1755, %v2304
        %2314 = vset.pattern.permute.xlu0 1
        %2315 = vperm.xlu0 %2314, %v499
        %v2316 = vpop.permute.xlu0 %2315
        %2317 = vset.pattern.permute.xlu0 1
        %2318 = vperm.xlu0 %2317, %v501
        %v2319 = vpop.permute.xlu0 %2318
        %2320 = vset.pattern.permute.xlu0 1
        %2321 = vperm.xlu0 %2320, %v503
        %v2322 = vpop.permute.xlu0 %2321
        %2323 = vset.pattern.permute.xlu0 1
        %2324 = vperm.xlu0 %2323, %v505
        %v2325 = vpop.permute.xlu0 %2324
        %2326 = vset.pattern.permute.xlu0 1
        %2327 = vperm.xlu0 %2326, %v635
        %v2328 = vpop.permute.xlu0 %2327
        %2329 = vset.pattern.permute.xlu0 1
        %2330 = vperm.xlu0 %2329, %v637
        %v2331 = vpop.permute.xlu0 %2330
        %2332 = vset.pattern.permute.xlu0 1
        %2333 = vperm.xlu0 %2332, %v639
        %v2334 = vpop.permute.xlu0 %2333
        %2335 = vset.pattern.permute.xlu0 1
        %2336 = vperm.xlu0 %2335, %v641
        %v2337 = vpop.permute.xlu0 %2336
        %2338 = vset.pattern.permute.xlu0 1
        %2339 = vperm.xlu0 %2338, %v771
        %v2340 = vpop.permute.xlu0 %2339
        %2341 = vset.pattern.permute.xlu0 1
        %2342 = vperm.xlu0 %2341, %v773
        %v2343 = vpop.permute.xlu0 %2342
        %2344 = vset.pattern.permute.xlu0 1
        %2345 = vperm.xlu0 %2344, %v775
        %v2346 = vpop.permute.xlu0 %2345
        %2347 = vset.pattern.permute.xlu0 1
        %2348 = vperm.xlu0 %2347, %v777
        %v2349 = vpop.permute.xlu0 %2348
        %2350 = vset.pattern.permute.xlu0 1
        %2351 = vperm.xlu0 %2350, %v907
        %v2352 = vpop.permute.xlu0 %2351
        %2353 = vset.pattern.permute.xlu0 1
        %2354 = vperm.xlu0 %2353, %v909
        %v2355 = vpop.permute.xlu0 %2354
        %2356 = vset.pattern.permute.xlu0 1
        %2357 = vperm.xlu0 %2356, %v911
        %v2358 = vpop.permute.xlu0 %2357
        %2359 = vset.pattern.permute.xlu0 1
        %2360 = vperm.xlu0 %2359, %v913
        %v2361 = vpop.permute.xlu0 %2360
        %2362 = vset.pattern.permute.xlu0 1
        %2363 = vperm.xlu0 %2362, %v1043
        %v2364 = vpop.permute.xlu0 %2363
        %2365 = vset.pattern.permute.xlu0 1
        %2366 = vperm.xlu0 %2365, %v1045
        %v2367 = vpop.permute.xlu0 %2366
        %2368 = vset.pattern.permute.xlu0 1
        %2369 = vperm.xlu0 %2368, %v1047
        %v2370 = vpop.permute.xlu0 %2369
        %2371 = vset.pattern.permute.xlu0 1
        %2372 = vperm.xlu0 %2371, %v1049
        %v2373 = vpop.permute.xlu0 %2372
        %2374 = vset.pattern.permute.xlu0 1
        %2375 = vperm.xlu0 %2374, %v1179
        %v2376 = vpop.permute.xlu0 %2375
        %2377 = vset.pattern.permute.xlu0 1
        %2378 = vperm.xlu0 %2377, %v1181
        %v2379 = vpop.permute.xlu0 %2378
        %2380 = vset.pattern.permute.xlu0 1
        %2381 = vperm.xlu0 %2380, %v1183
        %v2382 = vpop.permute.xlu0 %2381
        %2383 = vset.pattern.permute.xlu0 1
        %2384 = vperm.xlu0 %2383, %v1185
        %v2385 = vpop.permute.xlu0 %2384
        %2386 = vset.pattern.permute.xlu0 1
        %2387 = vperm.xlu0 %2386, %v1315
        %v2388 = vpop.permute.xlu0 %2387
        %2389 = vset.pattern.permute.xlu0 1
        %2390 = vperm.xlu0 %2389, %v1317
        %v2391 = vpop.permute.xlu0 %2390
        %2392 = vset.pattern.permute.xlu0 1
        %2393 = vperm.xlu0 %2392, %v1319
        %v2394 = vpop.permute.xlu0 %2393
        %2395 = vset.pattern.permute.xlu0 1
        %2396 = vperm.xlu0 %2395, %v1321
        %v2397 = vpop.permute.xlu0 %2396
        %2398 = vset.pattern.permute.xlu0 1
        %2399 = vperm.xlu0 %2398, %v1451
        %v2400 = vpop.permute.xlu0 %2399
        %2401 = vset.pattern.permute.xlu0 1
        %2402 = vperm.xlu0 %2401, %v1453
        %v2403 = vpop.permute.xlu0 %2402
        %2404 = vset.pattern.permute.xlu0 1
        %2405 = vperm.xlu0 %2404, %v1455
        %v2406 = vpop.permute.xlu0 %2405
        %2407 = vset.pattern.permute.xlu0 1
        %2408 = vperm.xlu0 %2407, %v1457
        %v2409 = vpop.permute.xlu0 %2408
        %v2410 = vlaneseq
        %v2411 = vshrl.u32 %v2410, 7
        %v2412 = vsub.s32 %v1587, %v2411
        %v2413 = vrot.slane %v2316, %v2412
        %v2414 = vlaneseq
        %v2415 = vshrl.u32 %v2414, 7
        %v2416 = vsub.s32 %v1587, %v2415
        %v2417 = vrot.slane %v2319, %v2416
        %v2418 = vlaneseq
        %v2419 = vshrl.u32 %v2418, 7
        %v2420 = vsub.s32 %v1587, %v2419
        %v2421 = vrot.slane %v2322, %v2420
        %v2422 = vlaneseq
        %v2423 = vshrl.u32 %v2422, 7
        %v2424 = vsub.s32 %v1587, %v2423
        %v2425 = vrot.slane %v2325, %v2424
        %v2426 = vlaneseq
        %v2427 = vshrl.u32 %v2426, 7
        %v2428 = vsub.s32 %v1587, %v2427
        %v2429 = vrot.slane %v2328, %v2428
        %v2430 = vlaneseq
        %v2431 = vshrl.u32 %v2430, 7
        %v2432 = vsub.s32 %v1587, %v2431
        %v2433 = vrot.slane %v2331, %v2432
        %v2434 = vlaneseq
        %v2435 = vshrl.u32 %v2434, 7
        %v2436 = vsub.s32 %v1587, %v2435
        %v2437 = vrot.slane %v2334, %v2436
        %v2438 = vlaneseq
        %v2439 = vshrl.u32 %v2438, 7
        %v2440 = vsub.s32 %v1587, %v2439
        %v2441 = vrot.slane %v2337, %v2440
        %v2442 = vlaneseq
        %v2443 = vshrl.u32 %v2442, 7
        %v2444 = vsub.s32 %v1587, %v2443
        %v2445 = vrot.slane %v2340, %v2444
        %v2446 = vlaneseq
        %v2447 = vshrl.u32 %v2446, 7
        %v2448 = vsub.s32 %v1587, %v2447
        %v2449 = vrot.slane %v2343, %v2448
        %v2450 = vlaneseq
        %v2451 = vshrl.u32 %v2450, 7
        %v2452 = vsub.s32 %v1587, %v2451
        %v2453 = vrot.slane %v2346, %v2452
        %v2454 = vlaneseq
        %v2455 = vshrl.u32 %v2454, 7
        %v2456 = vsub.s32 %v1587, %v2455
        %v2457 = vrot.slane %v2349, %v2456
        %v2458 = vlaneseq
        %v2459 = vshrl.u32 %v2458, 7
        %v2460 = vsub.s32 %v1587, %v2459
        %v2461 = vrot.slane %v2352, %v2460
        %v2462 = vlaneseq
        %v2463 = vshrl.u32 %v2462, 7
        %v2464 = vsub.s32 %v1587, %v2463
        %v2465 = vrot.slane %v2355, %v2464
        %v2466 = vlaneseq
        %v2467 = vshrl.u32 %v2466, 7
        %v2468 = vsub.s32 %v1587, %v2467
        %v2469 = vrot.slane %v2358, %v2468
        %v2470 = vlaneseq
        %v2471 = vshrl.u32 %v2470, 7
        %v2472 = vsub.s32 %v1587, %v2471
        %v2473 = vrot.slane %v2361, %v2472
        %v2474 = vlaneseq
        %v2475 = vshrl.u32 %v2474, 7
        %v2476 = vsub.s32 %v1587, %v2475
        %v2477 = vrot.slane %v2364, %v2476
        %v2478 = vlaneseq
        %v2479 = vshrl.u32 %v2478, 7
        %v2480 = vsub.s32 %v1587, %v2479
        %v2481 = vrot.slane %v2367, %v2480
        %v2482 = vlaneseq
        %v2483 = vshrl.u32 %v2482, 7
        %v2484 = vsub.s32 %v1587, %v2483
        %v2485 = vrot.slane %v2370, %v2484
        %v2486 = vlaneseq
        %v2487 = vshrl.u32 %v2486, 7
        %v2488 = vsub.s32 %v1587, %v2487
        %v2489 = vrot.slane %v2373, %v2488
        %v2490 = vlaneseq
        %v2491 = vshrl.u32 %v2490, 7
        %v2492 = vsub.s32 %v1587, %v2491
        %v2493 = vrot.slane %v2376, %v2492
        %v2494 = vlaneseq
        %v2495 = vshrl.u32 %v2494, 7
        %v2496 = vsub.s32 %v1587, %v2495
        %v2497 = vrot.slane %v2379, %v2496
        %v2498 = vlaneseq
        %v2499 = vshrl.u32 %v2498, 7
        %v2500 = vsub.s32 %v1587, %v2499
        %v2501 = vrot.slane %v2382, %v2500
        %v2502 = vlaneseq
        %v2503 = vshrl.u32 %v2502, 7
        %v2504 = vsub.s32 %v1587, %v2503
        %v2505 = vrot.slane %v2385, %v2504
        %v2506 = vlaneseq
        %v2507 = vshrl.u32 %v2506, 7
        %v2508 = vsub.s32 %v1587, %v2507
        %v2509 = vrot.slane %v2388, %v2508
        %v2510 = vlaneseq
        %v2511 = vshrl.u32 %v2510, 7
        %v2512 = vsub.s32 %v1587, %v2511
        %v2513 = vrot.slane %v2391, %v2512
        %v2514 = vlaneseq
        %v2515 = vshrl.u32 %v2514, 7
        %v2516 = vsub.s32 %v1587, %v2515
        %v2517 = vrot.slane %v2394, %v2516
        %v2518 = vlaneseq
        %v2519 = vshrl.u32 %v2518, 7
        %v2520 = vsub.s32 %v1587, %v2519
        %v2521 = vrot.slane %v2397, %v2520
        %v2522 = vlaneseq
        %v2523 = vshrl.u32 %v2522, 7
        %v2524 = vsub.s32 %v1587, %v2523
        %v2525 = vrot.slane %v2400, %v2524
        %v2526 = vlaneseq
        %v2527 = vshrl.u32 %v2526, 7
        %v2528 = vsub.s32 %v1587, %v2527
        %v2529 = vrot.slane %v2403, %v2528
        %v2530 = vlaneseq
        %v2531 = vshrl.u32 %v2530, 7
        %v2532 = vsub.s32 %v1587, %v2531
        %v2533 = vrot.slane %v2406, %v2532
        %v2534 = vlaneseq
        %v2535 = vshrl.u32 %v2534, 7
        %v2536 = vsub.s32 %v1587, %v2535
        %v2537 = vrot.slane %v2409, %v2536
        %v2538 = vsel %vm1716, %v2417, %v2413
        %v2539 = vsel %vm1718, %v2421, %v2538
        %v2540 = vsel %vm1720, %v2425, %v2539
        %v2541 = vsel %vm1722, %v2429, %v2540
        %v2542 = vsel %vm1724, %v2433, %v2541
        %v2543 = vsel %vm1726, %v2437, %v2542
        %v2544 = vsel %vm1728, %v2441, %v2543
        %v2545 = vsel %vm1716, %v2449, %v2445
        %v2546 = vsel %vm1718, %v2453, %v2545
        %v2547 = vsel %vm1720, %v2457, %v2546
        %v2548 = vsel %vm1722, %v2461, %v2547
        %v2549 = vsel %vm1724, %v2465, %v2548
        %v2550 = vsel %vm1726, %v2469, %v2549
        %v2551 = vsel %vm1728, %v2473, %v2550
        %v2552 = vsel %vm1716, %v2481, %v2477
        %v2553 = vsel %vm1718, %v2485, %v2552
        %v2554 = vsel %vm1720, %v2489, %v2553
        %v2555 = vsel %vm1722, %v2493, %v2554
        %v2556 = vsel %vm1724, %v2497, %v2555
        %v2557 = vsel %vm1726, %v2501, %v2556
        %v2558 = vsel %vm1728, %v2505, %v2557
        %v2559 = vsel %vm1716, %v2513, %v2509
        %v2560 = vsel %vm1718, %v2517, %v2559
        %v2561 = vsel %vm1720, %v2521, %v2560
        %v2562 = vsel %vm1722, %v2525, %v2561
        %v2563 = vsel %vm1724, %v2529, %v2562
        %v2564 = vsel %vm1726, %v2533, %v2563
        %v2565 = vsel %vm1728, %v2537, %v2564
        %s2570 = scalar_lea.vmem %s184, 96
        %2571 = vst.msk [vmem:[%s2570] sm:$0xff] %vm1755, %v2544
        %2572 = vst.msk [vmem:[%s2570 + $0x8] sm:$0xff] %vm1755, %v2551
        %2573 = vst.msk [vmem:[%s2570 + $0x10] sm:$0xff] %vm1755, %v2558
        %2574 = vst.msk [vmem:[%s2570 + $0x18] sm:$0xff] %vm1755, %v2565
        %s2575 = smul.u32 4, %s21
        %p2576 = scmp.lt.s32.totalorder %s20, 1
        %s2577 = scalar_select %p2576, %s20, 1
        %p2578 = scmp.lt.s32.totalorder %s2575, 3
        %s2579 = scalar_select %p2578, %s2575, 3
        %p2580 = scmp.lt.s32.totalorder %s22, 0
        %s2581 = scalar_select %p2580, %s22, 0
        %s2582 = sadd.s32 %s2581, %s2579
        %s2583 = smul.addr %s2577, 16
        %s2584 = sadd.s32 %s2582, %s2583
        %s2585 = smul.addr %s2584, 8
        %s2586 = scalar_lea.vmem %s1, %s2585
        // Predicated region
        $region29: #{space_to_depth.1} parent=23 // pred_check
          %p2587 = pneg %p86
        $region30: #{space_to_depth.1} parent=23 // pred_check_branch
          %2589 = sbr.rel (%p2587) target = $region32
        $region31: #{space_to_depth.1} parent=23 // pred_region
          %s2590 = smul.u32 4, %s21
        $region32: #{space_to_depth.1} parent=23 // pred_fallthru
          _
      $region24: #{space_to_depth.1} parent=5 // pred_fallthru
        _
      %p2591 = scmp.le.s32.totalorder 2, %s10
      // Predicated region
      $region33: #{space_to_depth.1} parent=5 // pred_check
        %p2592 = pneg %p2591
      $region34: #{space_to_depth.1} parent=5 // pred_check_branch
        %2594 = sbr.rel (%p2592) target = $region36
      $region35: #{space_to_depth.1} parent=5 // pred_region
        %s2595 = ssub.s32 %s10, 2
        // Predicated region
        $region37: #{space_to_depth.1} parent=35 // pred_check
          %p2596 = pneg %p92
        $region38: #{space_to_depth.1} parent=35 // pred_check_branch
          %2598 = sbr.rel (%p2596) target = $region40
        $region39: #{space_to_depth.1} parent=35 // pred_region
          %s2599 = smul.u32 4, %s24
          %p2600 = scmp.lt.s32.totalorder %s23, 1
          %s2601 = scalar_select %p2600, %s23, 1
          %p2602 = scmp.lt.s32.totalorder %s2599, 3
          %s2603 = scalar_select %p2602, %s2599, 3
          %p2604 = scmp.lt.s32.totalorder %s25, 0
          %s2605 = scalar_select %p2604, %s25, 0
          %s2606 = sadd.s32 %s2605, %s2603
          %s2607 = smul.addr %s2601, 16
          %s2608 = sadd.s32 %s2606, %s2607
          %s2609 = smul.addr %s2608, 8
          %s2610 = scalar_lea.vmem %s1, %s2609
        $region40: #{space_to_depth.1} parent=35 // pred_fallthru
          _
      $region36: #{space_to_depth.1} parent=5 // pred_fallthru
        _
    $region6: #{space_to_depth.1} parent=1 // loop_footer
      %s14 = sadd.s32 1, %s10
    $region7: #{space_to_depth.1} parent=1 // loop_footer_branch
      %9 = sbr.rel target = $region3
    $region8: #{space_to_depth.1} parent=1 // loop_exit
      _
    %2611 = vsyncpa [#allocation3], 1
    %s2612 = scalar_lea.sflag [#allocation3], 1
    %2613 = vsyncpa %s2612, 1

</llo_original>
